<compile_context>
chip_gen: v7x
topology: tpu7x:2x2x1
jax: 0.10.0
libtpu: 0.0.40
codegen_flags: <defaults>
</compile_context>

<pallas_src>
import functools

import jax
import jax.numpy as jnp
from jax.experimental import pallas as pl
from jax.experimental.pallas import tpu as pltpu

LANE = 128
TM_PREF = 512          # A_hat row tile
TK_PREF = 2048         # A_hat contraction (K) tile
SINGLE_K_MAX = 4096    # up to this n_pad: tk = n_pad (single K step per row tile)
Z_RESIDENT_BYTES = 16 * 1024 * 1024   # keep z fully VMEM-resident below this


def _default_vmem_limit():
    # 75% of physical VMEM (v5e/v6e: 96 MiB, v7x: 48 MiB); safe fallback 48 MiB.
    try:
        return int(pltpu.get_tpu_info().vmem_capacity_bytes * 3 // 4)
    except Exception:
        return 48 * 1024 * 1024


VMEM_LIMIT = _default_vmem_limit()


def _round_up(v, m):
    return ((v + m - 1) // m) * m


def _choose_tiles(n):
    """Pick (n_pad, tm, tk): pad N up to a tile multiple rather than shrinking tiles."""
    n128 = _round_up(n, LANE)
    if n128 <= SINGLE_K_MAX:
        tm = min(TM_PREF, n128)
        n_pad = _round_up(n128, tm)
        tk = n_pad                      # single K step
    else:
        tm = TM_PREF
        n_pad = _round_up(n128, 1024)   # <=1023 zero rows of padding
        tk = TK_PREF if n_pad % TK_PREF == 0 else 1024
    return n_pad, tm, tk


def _pad2(a, rows, cols):
    return jnp.pad(a, ((0, rows - a.shape[0]), (0, cols - a.shape[1])))


# ---------------------------------------------------------------------------
# Kernel 1: fused SpMM + epilogue, multi-K-step variant.
#   out = relu(A_hat @ z + b_in) @ W_epi + b_epi
# grid = (row_tiles, k_tiles); f32 VMEM accumulator over the K axis.
# ---------------------------------------------------------------------------
def _spmm_fused_kernel_multi(a_ref, z_ref, b_in_ref, w_epi_ref, b_epi_ref,
                             out_ref, acc_ref, *, z_resident, tk):
    k = pl.program_id(1)

    @pl.when(k == 0)
    def _():
        acc_ref[...] = jnp.zeros_like(acc_ref)

    if z_resident:
        start = pl.multiple_of(k * tk, LANE)
        z = z_ref[pl.ds(start, tk), :]
    else:
        z = z_ref[...]
    acc_ref[...] += jnp.dot(a_ref[...], z, preferred_element_type=jnp.float32)

    @pl.when(k == pl.num_programs(1) - 1)
    def _():
        h = jnp.maximum(acc_ref[...] + b_in_ref[...], 0.0)
        y = jnp.dot(h.astype(w_epi_ref.dtype), w_epi_ref[...],
                    preferred_element_type=jnp.float32) + b_epi_ref[...]
        out_ref[...] = y.astype(out_ref.dtype)


# Single-K-step variant (tk == n_pad): no accumulator scratch, no pl.when.
def _spmm_fused_kernel_single(a_ref, z_ref, b_in_ref, w_epi_ref, b_epi_ref,
                              out_ref):
    acc = jnp.dot(a_ref[...], z_ref[...], preferred_element_type=jnp.float32)
    h = jnp.maximum(acc + b_in_ref[...], 0.0)
    y = jnp.dot(h.astype(w_epi_ref.dtype), w_epi_ref[...],
                preferred_element_type=jnp.float32) + b_epi_ref[...]
    out_ref[...] = y.astype(out_ref.dtype)


def spmm_fused(a, z, b_in, w_epi, b_epi, *, out_dtype, tm, tk, z_resident):
    n_pad = a.shape[0]
    h_pad = z.shape[1]
    out_dim = w_epi.shape[1]
    k_tiles = n_pad // tk

    if k_tiles == 1:
        grid = (n_pad // tm,)
        in_specs = [
            pl.BlockSpec((tm, n_pad), lambda i: (i, 0)),
            pl.BlockSpec((n_pad, h_pad), lambda i: (0, 0)),
            pl.BlockSpec((1, h_pad), lambda i: (0, 0)),
            pl.BlockSpec((h_pad, out_dim), lambda i: (0, 0)),
            pl.BlockSpec((1, out_dim), lambda i: (0, 0)),
        ]
        out_specs = pl.BlockSpec((tm, out_dim), lambda i: (i, 0))
        kernel = _spmm_fused_kernel_single
        scratch = []
        dims = ("parallel",)
    else:
        grid = (n_pad // tm, k_tiles)
        if z_resident:
            z_spec = pl.BlockSpec((n_pad, h_pad), lambda i, k: (0, 0))
        else:
            z_spec = pl.BlockSpec((tk, h_pad), lambda i, k: (k, 0))
        in_specs = [
            pl.BlockSpec((tm, tk), lambda i, k: (i, k)),
            z_spec,
            pl.BlockSpec((1, h_pad), lambda i, k: (0, 0)),
            pl.BlockSpec((h_pad, out_dim), lambda i, k: (0, 0)),
            pl.BlockSpec((1, out_dim), lambda i, k: (0, 0)),
        ]
        out_specs = pl.BlockSpec((tm, out_dim), lambda i, k: (i, 0))
        kernel = functools.partial(_spmm_fused_kernel_multi,
                                   z_resident=z_resident, tk=tk)
        scratch = [pltpu.VMEM((tm, h_pad), jnp.float32)]
        # TODO(synk): on v7x verify the "parallel" row axis actually shards
        # across both TensorCores; else switch to an explicit core split.
        dims = ("parallel", "arbitrary")

    return pl.pallas_call(
        kernel,
        out_shape=jax.ShapeDtypeStruct((n_pad, out_dim), out_dtype),
        grid_spec=pltpu.PrefetchScalarGridSpec(
            num_scalar_prefetch=0,
            grid=grid,
            in_specs=in_specs,
            out_specs=out_specs,
            scratch_shapes=scratch,
        ),
        compiler_params=pltpu.CompilerParams(
            dimension_semantics=dims,
            vmem_limit_bytes=VMEM_LIMIT,
        ),
    )(a, z, b_in, w_epi, b_epi)


# ---------------------------------------------------------------------------
# Kernel 2: row-tiled thin dense matmul   y = x @ W   (only x @ W1 remains)
# ---------------------------------------------------------------------------
def _dense_kernel(x_ref, w_ref, out_ref):
    out_ref[...] = jnp.dot(x_ref[...], w_ref[...],
                           preferred_element_type=jnp.float32
                           ).astype(out_ref.dtype)


def dense(x, w, *, out_dtype, tm):
    n_pad, in_dim = x.shape
    out_dim = w.shape[1]
    return pl.pallas_call(
        _dense_kernel,
        out_shape=jax.ShapeDtypeStruct((n_pad, out_dim), out_dtype),
        grid_spec=pltpu.PrefetchScalarGridSpec(
            num_scalar_prefetch=0,
            grid=(n_pad // tm,),
            in_specs=[
                pl.BlockSpec((tm, in_dim), lambda i: (i, 0)),
                pl.BlockSpec((in_dim, out_dim), lambda i: (0, 0)),
            ],
            out_specs=pl.BlockSpec((tm, out_dim), lambda i: (i, 0)),
        ),
        compiler_params=pltpu.CompilerParams(
            dimension_semantics=("parallel",),
            vmem_limit_bytes=VMEM_LIMIT,
        ),
    )(x, w)


# ---------------------------------------------------------------------------
# Graph glue + forward
# ---------------------------------------------------------------------------
def gcn_norm_adj(edge_index, num_nodes):
    """Dense symmetric-normalized adjacency with self-loops (PyG gcn_norm).
    NOTE: duplicate edges / pre-existing self-loops accumulate (scatter-add)."""
    src, dst = edge_index[0], edge_index[1]
    a = jnp.zeros((num_nodes, num_nodes), jnp.float32)
    a = a.at[dst, src].add(1.0)                       # message src -> dst
    a = a + jnp.eye(num_nodes, dtype=jnp.float32)     # self-loops
    deg = jnp.sum(a, axis=1)
    d_inv_sqrt = jnp.where(deg > 0, 1.0 / jnp.sqrt(deg), 0.0)
    return d_inv_sqrt[:, None] * a * d_inv_sqrt[None, :]


def gnn_classifier_forward(x, edge_index, params):
    n, f = x.shape
    h = params["w1"].shape[1]
    c = params["wh"].shape[1]

    n_pad, tm, tk = _choose_tiles(n)
    f_pad = _round_up(f, LANE)
    h_pad = _round_up(h, LANE)
    c_pad = _round_up(c, LANE)

    # Dense normalized adjacency, padded + bf16 (dominant HBM operand).
    # TODO(synk): for large sparse graphs, replace the dense A_hat with CSR
    #             row-ptr / neighbor-id scalar prefetch + DMA gather.
    # TODO(synk): int8 (v5e/v6e) / fp8-e4m3 (v7x) A_hat storage would halve HBM
    #             traffic but needs its own accuracy validation vs f32 GCN.
    a_hat = _pad2(gcn_norm_adj(edge_index, n), n_pad, n_pad).astype(jnp.bfloat16)

    x_p = _pad2(x, n_pad, f_pad).astype(jnp.bfloat16)
    w1 = _pad2(params["w1"], f_pad, h_pad).astype(jnp.bfloat16)
    w2 = _pad2(params["w2"], h_pad, h_pad).astype(jnp.bfloat16)
    wh = _pad2(params["wh"], h_pad, c_pad).astype(jnp.bfloat16)
    b1 = _pad2(params["b1"], 1, h_pad).astype(jnp.float32)
    b2 = _pad2(params["b2"], 1, h_pad).astype(jnp.float32)
    bh = _pad2(params["bh"], 1, c_pad).astype(jnp.float32)
    zero_h = jnp.zeros((1, h_pad), jnp.float32)

    z_resident = n_pad * h_pad * 2 <= Z_RESIDENT_BYTES

    # Standalone thin matmul keeps its own (larger) row tile.
    tm_dense = tm
    while tm_dense * 2 <= min(n_pad, 4096) and n_pad % (tm_dense * 2) == 0:
        tm_dense *= 2

    # --- GCN layer 1 projection (dropout = identity in eval):  xw1 = x @ W1
    xw1 = dense(x_p, w1, out_dtype=jnp.bfloat16, tm=tm_dense)

    # --- fused: hw2 = relu(A_hat @ xw1 + b1) @ W2     (h1 / h1@W2 stay on-chip)
    hw2 = spmm_fused(a_hat, xw1, b1, w2, zero_h,
                     out_dtype=jnp.bfloat16, tm=tm, tk=tk, z_resident=z_resident)

    # --- fused: logits = relu(A_hat @ hw2 + b2) @ Wh + bh
    #     (= head(emb) with Dropout as identity; emb never touches HBM)
    logits = spmm_fused(a_hat, hw2, b2, wh, bh,
                        out_dtype=jnp.float32, tm=tm, tk=tk, z_resident=z_resident)
    return logits[:n, :c]


def init_params(key, num_features, num_classes, hidden_dim):
    k1, k2, k3 = jax.random.split(key, 3)

    def glorot(k, fan_in, fan_out):
        lim = jnp.sqrt(6.0 / (fan_in + fan_out))
        return jax.random.uniform(k, (fan_in, fan_out), jnp.float32, -lim, lim)

    return {
        "w1": glorot(k1, num_features, hidden_dim),
        "b1": jnp.zeros((1, hidden_dim), jnp.float32),
        "w2": glorot(k2, hidden_dim, hidden_dim),
        "b2": jnp.zeros((1, hidden_dim), jnp.float32),
        "wh": glorot(k3, hidden_dim, num_classes),
        "bh": jnp.zeros((1, num_classes), jnp.float32),
    }


if __name__ == "__main__":
    key = jax.random.PRNGKey(0)
    num_nodes, num_features, hidden_dim, num_classes = 16, 8, 32, 4

    kx, kp = jax.random.split(key)
    x = jax.random.normal(kx, (num_nodes, num_features), jnp.float32)

    # deterministic bidirectional ring graph: 2*N directed edges
    src = jnp.arange(num_nodes, dtype=jnp.int32)
    dst = (src + 1) % num_nodes
    edge_index = jnp.stack([jnp.concatenate([src, dst]),
                            jnp.concatenate([dst, src])], axis=0)  # [2, 2N]

    params = init_params(kp, num_features, num_classes, hidden_dim)

    logits = jax.jit(gnn_classifier_forward)(x, edge_index, params)
    jax.block_until_ready(logits)

    # pure-JAX reference using the same bf16-compute / f32-accumulate recipe
    a_hat = gcn_norm_adj(edge_index, num_nodes).astype(jnp.bfloat16)
    xb = x.astype(jnp.bfloat16)
    w1b = params["w1"].astype(jnp.bfloat16)
    w2b = params["w2"].astype(jnp.bfloat16)
    whb = params["wh"].astype(jnp.bfloat16)
    f32dot = lambda a, b: jnp.dot(a, b, preferred_element_type=jnp.float32)
    xw1 = f32dot(xb, w1b).astype(jnp.bfloat16)
    h1 = jnp.maximum(f32dot(a_hat, xw1) + params["b1"], 0.0).astype(jnp.bfloat16)
    hw2 = f32dot(h1, w2b).astype(jnp.bfloat16)
    emb_relu = jnp.maximum(f32dot(a_hat, hw2) + params["b2"], 0.0).astype(jnp.bfloat16)
    ref = f32dot(emb_relu, whb) + params["bh"]

    assert logits.shape == (num_nodes, num_classes)
    assert bool(jnp.all(jnp.isfinite(logits)))
    assert jnp.allclose(logits, ref, atol=2e-2, rtol=2e-2)

    print("KERNEL_OK")
</pallas_src>

<mosaic_0001>
module attributes {stable_mosaic.version = 11 : i64} {
  func.func private @main(%arg0: i32) attributes {dimension_semantics = [#tpu.dimension_semantics<core_parallel>], iteration_bounds = array<i64: 2>, tpu.core_type = #tpu.core_type<sc_scalar_subcore>, window_params = []} {
    return
  }
}

module attributes {stable_mosaic.version = 11 : i64} {
  func.func private @main(%arg0: i32) attributes {dimension_semantics = [#tpu.dimension_semantics<core_parallel>], iteration_bounds = array<i64: 2>, tpu.core_type = #tpu.core_type<sc_scalar_subcore>, window_params = []} {
    return
  }
}

module attributes {stable_mosaic.version = 11 : i64} {
  func.func @_dense_kernel(%arg0: i32, %arg1: memref<128x128xbf16, #tpu.memory_space<vmem>>, %arg2: memref<128x128xbf16, #tpu.memory_space<vmem>>, %arg3: memref<128x128xbf16, #tpu.memory_space<vmem>>) attributes {dimension_semantics = [#tpu.dimension_semantics<parallel>], iteration_bounds = array<i64: 1>, scalar_prefetch = 0 : i64, scratch_operands = 0 : i64, tpu.core_type = #tpu.core_type<tc>, window_params = [{transform_indices = @transform_0, window_bounds = array<i64: 128, 128>}, {pipeline_mode = #tpu.pipeline_mode<synchronous>, transform_indices = @transform_1, window_bounds = array<i64: 128, 128>}, {transform_indices = @transform_2, window_bounds = array<i64: 128, 128>}]} {
    %c0 = arith.constant 0 : index
    %c0_0 = arith.constant 0 : index
    %0 = vector.load %arg1[%c0, %c0_0] : memref<128x128xbf16, #tpu.memory_space<vmem>>, vector<128x128xbf16>
    %c0_1 = arith.constant 0 : index
    %c0_2 = arith.constant 0 : index
    %1 = vector.load %arg2[%c0_1, %c0_2] : memref<128x128xbf16, #tpu.memory_space<vmem>>, vector<128x128xbf16>
    %cst = arith.constant dense<0.000000e+00> : vector<128x128xf32>
    %2 = tpu.matmul %0, %1, %cst {dimension_numbers = #tpu.dot_dimension_numbers<[1], [0], [0], [1], [0, 0, 1, 1], [], []>} : vector<128x128xbf16>, vector<128x128xbf16>, vector<128x128xf32> -> vector<128x128xf32>
    %3 = arith.truncf %2 : vector<128x128xf32> to vector<128x128xbf16>
    %c0_3 = arith.constant 0 : index
    %c0_4 = arith.constant 0 : index
    %4 = vector.load %arg3[%c0_3, %c0_4] : memref<128x128xbf16, #tpu.memory_space<vmem>>, vector<128x128xbf16>
    tpu.vector_store %arg3[%c0_3, %c0_4], %3 {strides = array<i32>} : memref<128x128xbf16, #tpu.memory_space<vmem>>, vector<128x128xbf16>,
    return
  }
  func.func @transform_0(%arg0: i32) -> (i32, i32) {
    %c0_i32 = arith.constant 0 : i32
    %c0_i32_0 = arith.constant 0 : i32
    return %arg0, %c0_i32 : i32, i32
  }
  func.func @transform_1(%arg0: i32) -> (i32, i32) {
    %c0_i32 = arith.constant 0 : i32
    %c0_i32_0 = arith.constant 0 : i32
    %c0_i32_1 = arith.constant 0 : i32
    return %c0_i32, %c0_i32_0 : i32, i32
  }
  func.func @transform_2(%arg0: i32) -> (i32, i32) {
    %c0_i32 = arith.constant 0 : i32
    %c0_i32_0 = arith.constant 0 : i32
    return %arg0, %c0_i32 : i32, i32
  }
}

module attributes {stable_mosaic.version = 11 : i64} {
  func.func @_spmm_fused_kernel_single(%arg0: i32, %arg1: memref<128x128xbf16, #tpu.memory_space<vmem>>, %arg2: memref<128x128xbf16, #tpu.memory_space<vmem>>, %arg3: memref<1x128xf32, #tpu.memory_space<vmem>>, %arg4: memref<128x128xbf16, #tpu.memory_space<vmem>>, %arg5: memref<1x128xf32, #tpu.memory_space<vmem>>, %arg6: memref<128x128xbf16, #tpu.memory_space<vmem>>) attributes {dimension_semantics = [#tpu.dimension_semantics<parallel>], iteration_bounds = array<i64: 1>, scalar_prefetch = 0 : i64, scratch_operands = 0 : i64, tpu.core_type = #tpu.core_type<tc>, window_params = [{transform_indices = @transform_0, window_bounds = array<i64: 128, 128>}, {pipeline_mode = #tpu.pipeline_mode<synchronous>, transform_indices = @transform_1, window_bounds = array<i64: 128, 128>}, {pipeline_mode = #tpu.pipeline_mode<synchronous>, transform_indices = @transform_2, window_bounds = array<i64: 1, 128>}, {pipeline_mode = #tpu.pipeline_mode<synchronous>, transform_indices = @transform_3, window_bounds = array<i64: 128, 128>}, {pipeline_mode = #tpu.pipeline_mode<synchronous>, transform_indices = @transform_4, window_bounds = array<i64: 1, 128>}, {transform_indices = @transform_5, window_bounds = array<i64: 128, 128>}]} {
    %c0 = arith.constant 0 : index
    %c0_0 = arith.constant 0 : index
    %0 = vector.load %arg1[%c0, %c0_0] : memref<128x128xbf16, #tpu.memory_space<vmem>>, vector<128x128xbf16>
    %c0_1 = arith.constant 0 : index
    %c0_2 = arith.constant 0 : index
    %1 = vector.load %arg2[%c0_1, %c0_2] : memref<128x128xbf16, #tpu.memory_space<vmem>>, vector<128x128xbf16>
    %cst = arith.constant dense<0.000000e+00> : vector<128x128xf32>
    %2 = tpu.matmul %0, %1, %cst {dimension_numbers = #tpu.dot_dimension_numbers<[1], [0], [0], [1], [0, 0, 1, 1], [], []>} : vector<128x128xbf16>, vector<128x128xbf16>, vector<128x128xf32> -> vector<128x128xf32>
    %c0_3 = arith.constant 0 : index
    %c0_4 = arith.constant 0 : index
    %3 = vector.load %arg3[%c0_3, %c0_4] : memref<1x128xf32, #tpu.memory_space<vmem>>, vector<1x128xf32>
    %4 = vector.broadcast %3 : vector<1x128xf32> to vector<128x128xf32>
    %5 = arith.addf %2, %4 : vector<128x128xf32>
    %cst_5 = arith.constant 0.000000e+00 : f32
    %6 = vector.broadcast %cst_5 : f32 to vector<128x128xf32>
    %7 = arith.maximumf %5, %6 : vector<128x128xf32>
    %8 = arith.truncf %7 : vector<128x128xf32> to vector<128x128xbf16>
    %c0_6 = arith.constant 0 : index
    %c0_7 = arith.constant 0 : index
    %9 = vector.load %arg4[%c0_6, %c0_7] : memref<128x128xbf16, #tpu.memory_space<vmem>>, vector<128x128xbf16>
    %cst_8 = arith.constant dense<0.000000e+00> : vector<128x128xf32>
    %10 = tpu.matmul %8, %9, %cst_8 {dimension_numbers = #tpu.dot_dimension_numbers<[1], [0], [0], [1], [0, 0, 1, 1], [], []>} : vector<128x128xbf16>, vector<128x128xbf16>, vector<128x128xf32> -> vector<128x128xf32>
    %c0_9 = arith.constant 0 : index
    %c0_10 = arith.constant 0 : index
    %11 = vector.load %arg5[%c0_9, %c0_10] : memref<1x128xf32, #tpu.memory_space<vmem>>, vector<1x128xf32>
    %12 = vector.broadcast %11 : vector<1x128xf32> to vector<128x128xf32>
    %13 = arith.addf %10, %12 : vector<128x128xf32>
    %14 = arith.truncf %13 : vector<128x128xf32> to vector<128x128xbf16>
    %c0_11 = arith.constant 0 : index
    %c0_12 = arith.constant 0 : index
    %15 = vector.load %arg6[%c0_11, %c0_12] : memref<128x128xbf16, #tpu.memory_space<vmem>>, vector<128x128xbf16>
    tpu.vector_store %arg6[%c0_11, %c0_12], %14 {strides = array<i32>} : memref<128x128xbf16, #tpu.memory_space<vmem>>, vector<128x128xbf16>,
    return
  }
  func.func @transform_0(%arg0: i32) -> (i32, i32) {
    %c0_i32 = arith.constant 0 : i32
    %c0_i32_0 = arith.constant 0 : i32
    return %arg0, %c0_i32 : i32, i32
  }
  func.func @transform_1(%arg0: i32) -> (i32, i32) {
    %c0_i32 = arith.constant 0 : i32
    %c0_i32_0 = arith.constant 0 : i32
    %c0_i32_1 = arith.constant 0 : i32
    return %c0_i32, %c0_i32_0 : i32, i32
  }
  func.func @transform_2(%arg0: i32) -> (i32, i32) {
    %c0_i32 = arith.constant 0 : i32
    %c0_i32_0 = arith.constant 0 : i32
    %c0_i32_1 = arith.constant 0 : i32
    return %c0_i32, %c0_i32_0 : i32, i32
  }
  func.func @transform_3(%arg0: i32) -> (i32, i32) {
    %c0_i32 = arith.constant 0 : i32
    %c0_i32_0 = arith.constant 0 : i32
    %c0_i32_1 = arith.constant 0 : i32
    return %c0_i32, %c0_i32_0 : i32, i32
  }
  func.func @transform_4(%arg0: i32) -> (i32, i32) {
    %c0_i32 = arith.constant 0 : i32
    %c0_i32_0 = arith.constant 0 : i32
    %c0_i32_1 = arith.constant 0 : i32
    return %c0_i32, %c0_i32_0 : i32, i32
  }
  func.func @transform_5(%arg0: i32) -> (i32, i32) {
    %c0_i32 = arith.constant 0 : i32
    %c0_i32_0 = arith.constant 0 : i32
    return %arg0, %c0_i32 : i32, i32
  }
}

module attributes {stable_mosaic.version = 11 : i64} {
  func.func @_spmm_fused_kernel_single(%arg0: i32, %arg1: memref<128x128xbf16, #tpu.memory_space<vmem>>, %arg2: memref<128x128xbf16, #tpu.memory_space<vmem>>, %arg3: memref<1x128xf32, #tpu.memory_space<vmem>>, %arg4: memref<128x128xbf16, #tpu.memory_space<vmem>>, %arg5: memref<1x128xf32, #tpu.memory_space<vmem>>, %arg6: memref<128x128xf32, #tpu.memory_space<vmem>>) attributes {dimension_semantics = [#tpu.dimension_semantics<parallel>], iteration_bounds = array<i64: 1>, scalar_prefetch = 0 : i64, scratch_operands = 0 : i64, tpu.core_type = #tpu.core_type<tc>, window_params = [{transform_indices = @transform_0, window_bounds = array<i64: 128, 128>}, {pipeline_mode = #tpu.pipeline_mode<synchronous>, transform_indices = @transform_1, window_bounds = array<i64: 128, 128>}, {pipeline_mode = #tpu.pipeline_mode<synchronous>, transform_indices = @transform_2, window_bounds = array<i64: 1, 128>}, {pipeline_mode = #tpu.pipeline_mode<synchronous>, transform_indices = @transform_3, window_bounds = array<i64: 128, 128>}, {pipeline_mode = #tpu.pipeline_mode<synchronous>, transform_indices = @transform_4, window_bounds = array<i64: 1, 128>}, {transform_indices = @transform_5, window_bounds = array<i64: 128, 128>}]} {
    %c0 = arith.constant 0 : index
    %c0_0 = arith.constant 0 : index
    %0 = vector.load %arg1[%c0, %c0_0] : memref<128x128xbf16, #tpu.memory_space<vmem>>, vector<128x128xbf16>
    %c0_1 = arith.constant 0 : index
    %c0_2 = arith.constant 0 : index
    %1 = vector.load %arg2[%c0_1, %c0_2] : memref<128x128xbf16, #tpu.memory_space<vmem>>, vector<128x128xbf16>
    %cst = arith.constant dense<0.000000e+00> : vector<128x128xf32>
    %2 = tpu.matmul %0, %1, %cst {dimension_numbers = #tpu.dot_dimension_numbers<[1], [0], [0], [1], [0, 0, 1, 1], [], []>} : vector<128x128xbf16>, vector<128x128xbf16>, vector<128x128xf32> -> vector<128x128xf32>
    %c0_3 = arith.constant 0 : index
    %c0_4 = arith.constant 0 : index
    %3 = vector.load %arg3[%c0_3, %c0_4] : memref<1x128xf32, #tpu.memory_space<vmem>>, vector<1x128xf32>
    %4 = vector.broadcast %3 : vector<1x128xf32> to vector<128x128xf32>
    %5 = arith.addf %2, %4 : vector<128x128xf32>
    %cst_5 = arith.constant 0.000000e+00 : f32
    %6 = vector.broadcast %cst_5 : f32 to vector<128x128xf32>
    %7 = arith.maximumf %5, %6 : vector<128x128xf32>
    %8 = arith.truncf %7 : vector<128x128xf32> to vector<128x128xbf16>
    %c0_6 = arith.constant 0 : index
    %c0_7 = arith.constant 0 : index
    %9 = vector.load %arg4[%c0_6, %c0_7] : memref<128x128xbf16, #tpu.memory_space<vmem>>, vector<128x128xbf16>
    %cst_8 = arith.constant dense<0.000000e+00> : vector<128x128xf32>
    %10 = tpu.matmul %8, %9, %cst_8 {dimension_numbers = #tpu.dot_dimension_numbers<[1], [0], [0], [1], [0, 0, 1, 1], [], []>} : vector<128x128xbf16>, vector<128x128xbf16>, vector<128x128xf32> -> vector<128x128xf32>
    %c0_9 = arith.constant 0 : index
    %c0_10 = arith.constant 0 : index
    %11 = vector.load %arg5[%c0_9, %c0_10] : memref<1x128xf32, #tpu.memory_space<vmem>>, vector<1x128xf32>
    %12 = vector.broadcast %11 : vector<1x128xf32> to vector<128x128xf32>
    %13 = arith.addf %10, %12 : vector<128x128xf32>
    %c0_11 = arith.constant 0 : index
    %c0_12 = arith.constant 0 : index
    %14 = vector.load %arg6[%c0_11, %c0_12] : memref<128x128xf32, #tpu.memory_space<vmem>>, vector<128x128xf32>
    tpu.vector_store %arg6[%c0_11, %c0_12], %13 {strides = array<i32>} : memref<128x128xf32, #tpu.memory_space<vmem>>, vector<128x128xf32>,
    return
  }
  func.func @transform_0(%arg0: i32) -> (i32, i32) {
    %c0_i32 = arith.constant 0 : i32
    %c0_i32_0 = arith.constant 0 : i32
    return %arg0, %c0_i32 : i32, i32
  }
  func.func @transform_1(%arg0: i32) -> (i32, i32) {
    %c0_i32 = arith.constant 0 : i32
    %c0_i32_0 = arith.constant 0 : i32
    %c0_i32_1 = arith.constant 0 : i32
    return %c0_i32, %c0_i32_0 : i32, i32
  }
  func.func @transform_2(%arg0: i32) -> (i32, i32) {
    %c0_i32 = arith.constant 0 : i32
    %c0_i32_0 = arith.constant 0 : i32
    %c0_i32_1 = arith.constant 0 : i32
    return %c0_i32, %c0_i32_0 : i32, i32
  }
  func.func @transform_3(%arg0: i32) -> (i32, i32) {
    %c0_i32 = arith.constant 0 : i32
    %c0_i32_0 = arith.constant 0 : i32
    %c0_i32_1 = arith.constant 0 : i32
    return %c0_i32, %c0_i32_0 : i32, i32
  }
  func.func @transform_4(%arg0: i32) -> (i32, i32) {
    %c0_i32 = arith.constant 0 : i32
    %c0_i32_0 = arith.constant 0 : i32
    %c0_i32_1 = arith.constant 0 : i32
    return %c0_i32, %c0_i32_0 : i32, i32
  }
  func.func @transform_5(%arg0: i32) -> (i32, i32) {
    %c0_i32 = arith.constant 0 : i32
    %c0_i32_0 = arith.constant 0 : i32
    return %arg0, %c0_i32 : i32, i32
  }
}

</mosaic_0001>

<llo_original>
// kernel: gnn_classifier_forward.3
$region0: #{gnn_classifier_forward.3}
  #allocation0 [shape = 'u32[]', space=smem, size = 0x4, offset = 0x4, fixed_abs, tag = 'smem constant byte address 0x4 - core index']
  #allocation1 [shape = 'u32[144,128]{1,0:T(1,128)}', space=vmem, size = 0x12000, scoped, tag = 'internal scratch']
  %s0 = inlined_call_operand.vmem [shape: bf16[128,128], index: 0, kind: input, shape index: {}]
  %s1 = inlined_call_operand.vmem [shape: bf16[128,128], index: 1, kind: input, shape index: {}]
  %s2 = inlined_call_operand.vmem [shape: bf16[128,128], index: 2, kind: output, shape index: {}]
  %s3 = sld [smem:[#allocation0]]
  $region18: #{gnn_classifier_forward.3} parent=0
    _
  %s5 = ssub.s32 1, %s3
  %s6 = scalar_select 0, %s5, %s3
  // Predicated region
  $region2: #{gnn_classifier_forward.3} parent=0 // pred_check
    _
  $region3: #{gnn_classifier_forward.3} parent=0 // pred_check_branch
    %8 = sbr.rel (0) target = $region5
  $region4: #{gnn_classifier_forward.3} parent=0 // pred_region
    _
  $region5: #{gnn_classifier_forward.3} parent=0 // pred_fallthru
    _
  // Predicated region
  $region6: #{gnn_classifier_forward.3} parent=0 // pred_check
    _
  $region7: #{gnn_classifier_forward.3} parent=0 // pred_check_branch
    %10 = sbr.rel (0) target = $region9
  $region8: #{gnn_classifier_forward.3} parent=0 // pred_region
    _
  $region9: #{gnn_classifier_forward.3} parent=0 // pred_fallthru
    _
  %v12 = vld [vmem:[%s0] sm:$0xf]
  %v13 = vld [vmem:[%s0 + $0x4] sm:$0xf]
  %v14 = vld [vmem:[%s0 + $0x8] sm:$0xf]
  %v15 = vld [vmem:[%s0 + $0xc] sm:$0xf]
  %v16 = vld [vmem:[%s0 + $0x10] sm:$0xf]
  %v17 = vld [vmem:[%s0 + $0x14] sm:$0xf]
  %v18 = vld [vmem:[%s0 + $0x18] sm:$0xf]
  %v19 = vld [vmem:[%s0 + $0x1c] sm:$0xf]
  %v20 = vld [vmem:[%s0 + $0x20] sm:$0xf]
  %v21 = vld [vmem:[%s0 + $0x24] sm:$0xf]
  %v22 = vld [vmem:[%s0 + $0x28] sm:$0xf]
  %v23 = vld [vmem:[%s0 + $0x2c] sm:$0xf]
  %v24 = vld [vmem:[%s0 + $0x30] sm:$0xf]
  %v25 = vld [vmem:[%s0 + $0x34] sm:$0xf]
  %v26 = vld [vmem:[%s0 + $0x38] sm:$0xf]
  %v27 = vld [vmem:[%s0 + $0x3c] sm:$0xf]
  %v28 = vld [vmem:[%s1] sm:$0xf]
  %v29 = vld [vmem:[%s1 + $0x4] sm:$0xf]
  %v30 = vld [vmem:[%s1 + $0x8] sm:$0xf]
  %v31 = vld [vmem:[%s1 + $0xc] sm:$0xf]
  %v32 = vld [vmem:[%s1 + $0x10] sm:$0xf]
  %v33 = vld [vmem:[%s1 + $0x14] sm:$0xf]
  %v34 = vld [vmem:[%s1 + $0x18] sm:$0xf]
  %v35 = vld [vmem:[%s1 + $0x1c] sm:$0xf]
  %v36 = vld [vmem:[%s1 + $0x20] sm:$0xf]
  %v37 = vld [vmem:[%s1 + $0x24] sm:$0xf]
  %v38 = vld [vmem:[%s1 + $0x28] sm:$0xf]
  %v39 = vld [vmem:[%s1 + $0x2c] sm:$0xf]
  %v40 = vld [vmem:[%s1 + $0x30] sm:$0xf]
  %v41 = vld [vmem:[%s1 + $0x34] sm:$0xf]
  %v42 = vld [vmem:[%s1 + $0x38] sm:$0xf]
  %v43 = vld [vmem:[%s1 + $0x3c] sm:$0xf]
  %v60 = vunpack.c.l.b16 %v12
  %v61 = vunpack.c.l.b16 %v13
  %v62 = vunpack.c.l.b16 %v14
  %v63 = vunpack.c.l.b16 %v15
  %v64 = vunpack.c.l.b16 %v16
  %v65 = vunpack.c.l.b16 %v17
  %v66 = vunpack.c.l.b16 %v18
  %v67 = vunpack.c.l.b16 %v19
  %v68 = vunpack.c.l.b16 %v20
  %v69 = vunpack.c.l.b16 %v21
  %v70 = vunpack.c.l.b16 %v22
  %v71 = vunpack.c.l.b16 %v23
  %v72 = vunpack.c.l.b16 %v24
  %v73 = vunpack.c.l.b16 %v25
  %v74 = vunpack.c.l.b16 %v26
  %v75 = vunpack.c.l.b16 %v27
  %v76 = vpack.c.b16 %v61, %v60
  %v77 = vpack.c.b16 %v63, %v62
  %v78 = vpack.c.b16 %v65, %v64
  %v79 = vpack.c.b16 %v67, %v66
  %v80 = vpack.c.b16 %v69, %v68
  %v81 = vpack.c.b16 %v71, %v70
  %v82 = vpack.c.b16 %v73, %v72
  %v83 = vpack.c.b16 %v75, %v74
  %v108 = vunpack.c.l.b16 %v28
  %v109 = vunpack.c.l.b16 %v29
  %v110 = vunpack.c.l.b16 %v30
  %v111 = vunpack.c.l.b16 %v31
  %v112 = vunpack.c.l.b16 %v32
  %v113 = vunpack.c.l.b16 %v33
  %v114 = vunpack.c.l.b16 %v34
  %v115 = vunpack.c.l.b16 %v35
  %v116 = vunpack.c.l.b16 %v36
  %v117 = vunpack.c.l.b16 %v37
  %v118 = vunpack.c.l.b16 %v38
  %v119 = vunpack.c.l.b16 %v39
  %v120 = vunpack.c.l.b16 %v40
  %v121 = vunpack.c.l.b16 %v41
  %v122 = vunpack.c.l.b16 %v42
  %v123 = vunpack.c.l.b16 %v43
  %v124 = vpack.c.b16 %v109, %v108
  %v125 = vpack.c.b16 %v111, %v110
  %v126 = vpack.c.b16 %v113, %v112
  %v127 = vpack.c.b16 %v115, %v114
  %v128 = vpack.c.b16 %v117, %v116
  %v129 = vpack.c.b16 %v119, %v118
  %v130 = vpack.c.b16 %v121, %v120
  %v131 = vpack.c.b16 %v123, %v122
  %140 = vmatprep.subr.bf16.mxu0 0
  %141 = vmatpush1.bf16.msra.mxu0 %v124
  %142 = vmatprep.subr.bf16.mxu0 0
  %143 = vmatpush1.bf16.msra.mxu0 %v125
  %144 = vmatprep.subr.bf16.mxu0 0
  %145 = vmatpush1.bf16.msra.mxu0 %v126
  %146 = vmatprep.subr.bf16.mxu0 0
  %147 = vmatpush1.bf16.msra.mxu0 %v127
  %148 = vmatprep.subr.bf16.mxu0 0
  %149 = vmatpush1.bf16.msra.mxu0 %v128
  %150 = vmatprep.subr.bf16.mxu0 0
  %151 = vmatpush1.bf16.msra.mxu0 %v129
  %152 = vmatprep.subr.bf16.mxu0 0
  %153 = vmatpush1.bf16.msra.mxu0 %v130
  %154 = vmatprep.subr.bf16.mxu0 0
  %155 = vmatpush1.bf16.msra.mxu0 %v131
  %156 = vmatprep.subr.bf16.mxu0 0
  %157 = vmatpush1.bf16.msra.mxu0 0
  %158 = vmatprep.subr.bf16.mxu0 0
  %159 = vmatpush1.bf16.msra.mxu0 0
  %160 = vmatprep.subr.bf16.mxu0 0
  %161 = vmatpush1.bf16.msra.mxu0 0
  %162 = vmatprep.subr.bf16.mxu0 0
  %163 = vmatpush1.bf16.msra.mxu0 0
  %164 = vmatprep.subr.bf16.mxu0 0
  %165 = vmatpush1.bf16.msra.mxu0 0
  %166 = vmatprep.subr.bf16.mxu0 0
  %167 = vmatpush1.bf16.msra.mxu0 0
  %168 = vmatprep.subr.bf16.mxu0 0
  %169 = vmatpush1.bf16.msra.mxu0 0
  %170 = vmatprep.subr.bf16.mxu0 0
  %171 = vmatpush1.bf16.msra.mxu0 0
  %172 = vmatprep.mubr.bf16.mxu0 0
  %173 = vmatmul.mubr.bf16.gmra.mrb[0].mxu0 %v76
  %v174 = vpop.f32.mrb[0].mxu0
  %v175 = vadd.f32 0.0, %v174
  %v176 = vpop.f32.mrb[0].mxu0
  %v177 = vpop.f32.mrb[0].mxu0
  %v178 = vadd.f32 0.0, %v177
  %v179 = vpop.f32.mrb[0].mxu0
  %180 = vmatprep.mubr.bf16.mxu0 0
  %181 = vmatmul.mubr.bf16.gmra.mrb[0].mxu0 %v77
  %v182 = vpop.f32.mrb[0].mxu0
  %v183 = vadd.f32 0.0, %v182
  %v184 = vpop.f32.mrb[0].mxu0
  %v185 = vpop.f32.mrb[0].mxu0
  %v186 = vadd.f32 0.0, %v185
  %v187 = vpop.f32.mrb[0].mxu0
  %188 = vmatprep.mubr.bf16.mxu0 0
  %189 = vmatmul.mubr.bf16.gmra.mrb[0].mxu0 %v78
  %v190 = vpop.f32.mrb[0].mxu0
  %v191 = vadd.f32 0.0, %v190
  %v192 = vpop.f32.mrb[0].mxu0
  %v193 = vpop.f32.mrb[0].mxu0
  %v194 = vadd.f32 0.0, %v193
  %v195 = vpop.f32.mrb[0].mxu0
  %196 = vmatprep.mubr.bf16.mxu0 0
  %197 = vmatmul.mubr.bf16.gmra.mrb[0].mxu0 %v79
  %v198 = vpop.f32.mrb[0].mxu0
  %v199 = vadd.f32 0.0, %v198
  %v200 = vpop.f32.mrb[0].mxu0
  %v201 = vpop.f32.mrb[0].mxu0
  %v202 = vadd.f32 0.0, %v201
  %v203 = vpop.f32.mrb[0].mxu0
  %204 = vmatprep.mubr.bf16.mxu0 0
  %205 = vmatmul.mubr.bf16.gmra.mrb[0].mxu0 %v80
  %v206 = vpop.f32.mrb[0].mxu0
  %v207 = vadd.f32 0.0, %v206
  %v208 = vpop.f32.mrb[0].mxu0
  %v209 = vpop.f32.mrb[0].mxu0
  %v210 = vadd.f32 0.0, %v209
  %v211 = vpop.f32.mrb[0].mxu0
  %212 = vmatprep.mubr.bf16.mxu0 0
  %213 = vmatmul.mubr.bf16.gmra.mrb[0].mxu0 %v81
  %v214 = vpop.f32.mrb[0].mxu0
  %v215 = vadd.f32 0.0, %v214
  %v216 = vpop.f32.mrb[0].mxu0
  %v217 = vpop.f32.mrb[0].mxu0
  %v218 = vadd.f32 0.0, %v217
  %v219 = vpop.f32.mrb[0].mxu0
  %220 = vmatprep.mubr.bf16.mxu0 0
  %221 = vmatmul.mubr.bf16.gmra.mrb[0].mxu0 %v82
  %v222 = vpop.f32.mrb[0].mxu0
  %v223 = vadd.f32 0.0, %v222
  %v224 = vpop.f32.mrb[0].mxu0
  %v225 = vpop.f32.mrb[0].mxu0
  %v226 = vadd.f32 0.0, %v225
  %v227 = vpop.f32.mrb[0].mxu0
  %228 = vmatprep.mubr.bf16.mxu0 0
  %229 = vmatmul.mubr.bf16.gmra.mrb[0].mxu0 %v83
  %v230 = vpop.f32.mrb[0].mxu0
  %v231 = vadd.f32 0.0, %v230
  %v232 = vpop.f32.mrb[0].mxu0
  %v233 = vpop.f32.mrb[0].mxu0
  %v234 = vadd.f32 0.0, %v233
  %v235 = vpop.f32.mrb[0].mxu0
  %236 = vdwg.mxu0
  %v237 = vpack.c.bf16 %v178, %v175
  %v238 = vpack.c.bf16 %v186, %v183
  %v239 = vpack.c.bf16 %v194, %v191
  %v240 = vpack.c.bf16 %v202, %v199
  %v241 = vpack.c.bf16 %v210, %v207
  %v242 = vpack.c.bf16 %v218, %v215
  %v243 = vpack.c.bf16 %v226, %v223
  %v244 = vpack.c.bf16 %v234, %v231
  %v253 = vunpack.c.l.b16 %v237
  %v254 = vunpack.c.h.b16 %v237
  %v255 = vunpack.c.l.b16 %v238
  %v256 = vunpack.c.h.b16 %v238
  %v257 = vunpack.c.l.b16 %v239
  %v258 = vunpack.c.h.b16 %v239
  %v259 = vunpack.c.l.b16 %v240
  %v260 = vunpack.c.h.b16 %v240
  %v261 = vunpack.c.l.b16 %v241
  %v262 = vunpack.c.h.b16 %v241
  %v263 = vunpack.c.l.b16 %v242
  %v264 = vunpack.c.h.b16 %v242
  %v265 = vunpack.c.l.b16 %v243
  %v266 = vunpack.c.h.b16 %v243
  %v267 = vunpack.c.l.b16 %v244
  %v268 = vunpack.c.h.b16 %v244
  %v269 = vpack.c.b16 %v253, %v253
  %v270 = vpack.c.b16 %v254, %v254
  %v271 = vpack.c.b16 %v255, %v255
  %v272 = vpack.c.b16 %v256, %v256
  %v273 = vpack.c.b16 %v257, %v257
  %v274 = vpack.c.b16 %v258, %v258
  %v275 = vpack.c.b16 %v259, %v259
  %v276 = vpack.c.b16 %v260, %v260
  %v277 = vpack.c.b16 %v261, %v261
  %v278 = vpack.c.b16 %v262, %v262
  %v279 = vpack.c.b16 %v263, %v263
  %v280 = vpack.c.b16 %v264, %v264
  %v281 = vpack.c.b16 %v265, %v265
  %v282 = vpack.c.b16 %v266, %v266
  %v283 = vpack.c.b16 %v267, %v267
  %v284 = vpack.c.b16 %v268, %v268
  %301 = vst [vmem:[%s2] sm:$0xf] %v269
  %302 = vst [vmem:[%s2 + $0x4] sm:$0xf] %v270
  %303 = vst [vmem:[%s2 + $0x8] sm:$0xf] %v271
  %304 = vst [vmem:[%s2 + $0xc] sm:$0xf] %v272
  %305 = vst [vmem:[%s2 + $0x10] sm:$0xf] %v273
  %306 = vst [vmem:[%s2 + $0x14] sm:$0xf] %v274
  %307 = vst [vmem:[%s2 + $0x18] sm:$0xf] %v275
  %308 = vst [vmem:[%s2 + $0x1c] sm:$0xf] %v276
  %309 = vst [vmem:[%s2 + $0x20] sm:$0xf] %v277
  %310 = vst [vmem:[%s2 + $0x24] sm:$0xf] %v278
  %311 = vst [vmem:[%s2 + $0x28] sm:$0xf] %v279
  %312 = vst [vmem:[%s2 + $0x2c] sm:$0xf] %v280
  %313 = vst [vmem:[%s2 + $0x30] sm:$0xf] %v281
  %314 = vst [vmem:[%s2 + $0x34] sm:$0xf] %v282
  %315 = vst [vmem:[%s2 + $0x38] sm:$0xf] %v283
  %316 = vst [vmem:[%s2 + $0x3c] sm:$0xf] %v284
  // Predicated region
  $region10: #{gnn_classifier_forward.3} parent=0 // pred_check
    _
  $region11: #{gnn_classifier_forward.3} parent=0 // pred_check_branch
    %318 = sbr.rel (0) target = $region13
  $region12: #{gnn_classifier_forward.3} parent=0 // pred_region
    _
  $region13: #{gnn_classifier_forward.3} parent=0 // pred_fallthru
    _
  // Predicated region
  $region14: #{gnn_classifier_forward.3} parent=0 // pred_check
    _
  $region15: #{gnn_classifier_forward.3} parent=0 // pred_check_branch
    %320 = sbr.rel (0) target = $region17
  $region16: #{gnn_classifier_forward.3} parent=0 // pred_region
    _
  $region17: #{gnn_classifier_forward.3} parent=0 // pred_fallthru
    _

// kernel: gnn_classifier_forward.4
$region0: #{gnn_classifier_forward.4}
  #allocation0 [shape = 'u32[]', space=smem, size = 0x4, offset = 0x4, fixed_abs, tag = 'smem constant byte address 0x4 - core index']
  #allocation1 [shape = 'u32[144,128]{1,0:T(1,128)}', space=vmem, size = 0x12000, scoped, tag = 'internal scratch']
  %s0 = inlined_call_operand.vmem [shape: bf16[128,128], index: 0, kind: input, shape index: {}]
  %s1 = inlined_call_operand.vmem [shape: bf16[128,128], index: 1, kind: input, shape index: {}]
  %s2 = inlined_call_operand.vmem [shape: f32[1,128], index: 2, kind: input, shape index: {}]
  %s3 = inlined_call_operand.vmem [shape: bf16[128,128], index: 3, kind: input, shape index: {}]
  %s4 = inlined_call_operand.vmem [shape: f32[1,128], index: 4, kind: input, shape index: {}]
  %s5 = inlined_call_operand.vmem [shape: bf16[128,128], index: 5, kind: output, shape index: {}]
  %s6 = sld [smem:[#allocation0]]
  $region30: #{gnn_classifier_forward.4} parent=0
    _
  %s8 = ssub.s32 1, %s6
  %s9 = scalar_select 0, %s8, %s6
  // Predicated region
  $region2: #{gnn_classifier_forward.4} parent=0 // pred_check
    _
  $region3: #{gnn_classifier_forward.4} parent=0 // pred_check_branch
    %11 = sbr.rel (0) target = $region5
  $region4: #{gnn_classifier_forward.4} parent=0 // pred_region
    _
  $region5: #{gnn_classifier_forward.4} parent=0 // pred_fallthru
    _
  // Predicated region
  $region6: #{gnn_classifier_forward.4} parent=0 // pred_check
    _
  $region7: #{gnn_classifier_forward.4} parent=0 // pred_check_branch
    %13 = sbr.rel (0) target = $region9
  $region8: #{gnn_classifier_forward.4} parent=0 // pred_region
    _
  $region9: #{gnn_classifier_forward.4} parent=0 // pred_fallthru
    _
  // Predicated region
  $region10: #{gnn_classifier_forward.4} parent=0 // pred_check
    _
  $region11: #{gnn_classifier_forward.4} parent=0 // pred_check_branch
    %15 = sbr.rel (0) target = $region13
  $region12: #{gnn_classifier_forward.4} parent=0 // pred_region
    _
  $region13: #{gnn_classifier_forward.4} parent=0 // pred_fallthru
    _
  // Predicated region
  $region14: #{gnn_classifier_forward.4} parent=0 // pred_check
    _
  $region15: #{gnn_classifier_forward.4} parent=0 // pred_check_branch
    %17 = sbr.rel (0) target = $region17
  $region16: #{gnn_classifier_forward.4} parent=0 // pred_region
    _
  $region17: #{gnn_classifier_forward.4} parent=0 // pred_fallthru
    _
  // Predicated region
  $region18: #{gnn_classifier_forward.4} parent=0 // pred_check
    _
  $region19: #{gnn_classifier_forward.4} parent=0 // pred_check_branch
    %19 = sbr.rel (0) target = $region21
  $region20: #{gnn_classifier_forward.4} parent=0 // pred_region
    _
  $region21: #{gnn_classifier_forward.4} parent=0 // pred_fallthru
    _
  %v21 = vld [vmem:[%s0] sm:$0xf]
  %v22 = vld [vmem:[%s0 + $0x4] sm:$0xf]
  %v23 = vld [vmem:[%s0 + $0x8] sm:$0xf]
  %v24 = vld [vmem:[%s0 + $0xc] sm:$0xf]
  %v25 = vld [vmem:[%s0 + $0x10] sm:$0xf]
  %v26 = vld [vmem:[%s0 + $0x14] sm:$0xf]
  %v27 = vld [vmem:[%s0 + $0x18] sm:$0xf]
  %v28 = vld [vmem:[%s0 + $0x1c] sm:$0xf]
  %v29 = vld [vmem:[%s0 + $0x20] sm:$0xf]
  %v30 = vld [vmem:[%s0 + $0x24] sm:$0xf]
  %v31 = vld [vmem:[%s0 + $0x28] sm:$0xf]
  %v32 = vld [vmem:[%s0 + $0x2c] sm:$0xf]
  %v33 = vld [vmem:[%s0 + $0x30] sm:$0xf]
  %v34 = vld [vmem:[%s0 + $0x34] sm:$0xf]
  %v35 = vld [vmem:[%s0 + $0x38] sm:$0xf]
  %v36 = vld [vmem:[%s0 + $0x3c] sm:$0xf]
  %v37 = vld [vmem:[%s1] sm:$0xf]
  %v38 = vld [vmem:[%s1 + $0x4] sm:$0xf]
  %v39 = vld [vmem:[%s1 + $0x8] sm:$0xf]
  %v40 = vld [vmem:[%s1 + $0xc] sm:$0xf]
  %v41 = vld [vmem:[%s1 + $0x10] sm:$0xf]
  %v42 = vld [vmem:[%s1 + $0x14] sm:$0xf]
  %v43 = vld [vmem:[%s1 + $0x18] sm:$0xf]
  %v44 = vld [vmem:[%s1 + $0x1c] sm:$0xf]
  %v45 = vld [vmem:[%s1 + $0x20] sm:$0xf]
  %v46 = vld [vmem:[%s1 + $0x24] sm:$0xf]
  %v47 = vld [vmem:[%s1 + $0x28] sm:$0xf]
  %v48 = vld [vmem:[%s1 + $0x2c] sm:$0xf]
  %v49 = vld [vmem:[%s1 + $0x30] sm:$0xf]
  %v50 = vld [vmem:[%s1 + $0x34] sm:$0xf]
  %v51 = vld [vmem:[%s1 + $0x38] sm:$0xf]
  %v52 = vld [vmem:[%s1 + $0x3c] sm:$0xf]
  %v53 = vld [vmem:[%s2] sm:$0x1]
  %v55 = vlaneseq
  %v56 = vshrl.u32 %v55, 7
  %v57 = vsub.s32 0, %v56
  %v58 = vrot.slane %v53, %v57
  %v76 = vunpack.c.l.b16 %v21
  %v77 = vunpack.c.l.b16 %v22
  %v78 = vunpack.c.l.b16 %v23
  %v79 = vunpack.c.l.b16 %v24
  %v80 = vunpack.c.l.b16 %v25
  %v81 = vunpack.c.l.b16 %v26
  %v82 = vunpack.c.l.b16 %v27
  %v83 = vunpack.c.l.b16 %v28
  %v84 = vunpack.c.l.b16 %v29
  %v85 = vunpack.c.l.b16 %v30
  %v86 = vunpack.c.l.b16 %v31
  %v87 = vunpack.c.l.b16 %v32
  %v88 = vunpack.c.l.b16 %v33
  %v89 = vunpack.c.l.b16 %v34
  %v90 = vunpack.c.l.b16 %v35
  %v91 = vunpack.c.l.b16 %v36
  %v92 = vpack.c.b16 %v77, %v76
  %v93 = vpack.c.b16 %v79, %v78
  %v94 = vpack.c.b16 %v81, %v80
  %v95 = vpack.c.b16 %v83, %v82
  %v96 = vpack.c.b16 %v85, %v84
  %v97 = vpack.c.b16 %v87, %v86
  %v98 = vpack.c.b16 %v89, %v88
  %v99 = vpack.c.b16 %v91, %v90
  %v124 = vunpack.c.l.b16 %v37
  %v125 = vunpack.c.l.b16 %v38
  %v126 = vunpack.c.l.b16 %v39
  %v127 = vunpack.c.l.b16 %v40
  %v128 = vunpack.c.l.b16 %v41
  %v129 = vunpack.c.l.b16 %v42
  %v130 = vunpack.c.l.b16 %v43
  %v131 = vunpack.c.l.b16 %v44
  %v132 = vunpack.c.l.b16 %v45
  %v133 = vunpack.c.l.b16 %v46
  %v134 = vunpack.c.l.b16 %v47
  %v135 = vunpack.c.l.b16 %v48
  %v136 = vunpack.c.l.b16 %v49
  %v137 = vunpack.c.l.b16 %v50
  %v138 = vunpack.c.l.b16 %v51
  %v139 = vunpack.c.l.b16 %v52
  %v140 = vpack.c.b16 %v125, %v124
  %v141 = vpack.c.b16 %v127, %v126
  %v142 = vpack.c.b16 %v129, %v128
  %v143 = vpack.c.b16 %v131, %v130
  %v144 = vpack.c.b16 %v133, %v132
  %v145 = vpack.c.b16 %v135, %v134
  %v146 = vpack.c.b16 %v137, %v136
  %v147 = vpack.c.b16 %v139, %v138
  %156 = vmatprep.subr.bf16.mxu0 0
  %157 = vmatpush1.bf16.msra.mxu0 %v140
  %158 = vmatprep.subr.bf16.mxu0 0
  %159 = vmatpush1.bf16.msra.mxu0 %v141
  %160 = vmatprep.subr.bf16.mxu0 0
  %161 = vmatpush1.bf16.msra.mxu0 %v142
  %162 = vmatprep.subr.bf16.mxu0 0
  %163 = vmatpush1.bf16.msra.mxu0 %v143
  %164 = vmatprep.subr.bf16.mxu0 0
  %165 = vmatpush1.bf16.msra.mxu0 %v144
  %166 = vmatprep.subr.bf16.mxu0 0
  %167 = vmatpush1.bf16.msra.mxu0 %v145
  %168 = vmatprep.subr.bf16.mxu0 0
  %169 = vmatpush1.bf16.msra.mxu0 %v146
  %170 = vmatprep.subr.bf16.mxu0 0
  %171 = vmatpush1.bf16.msra.mxu0 %v147
  %172 = vmatprep.subr.bf16.mxu0 0
  %173 = vmatpush1.bf16.msra.mxu0 0
  %174 = vmatprep.subr.bf16.mxu0 0
  %175 = vmatpush1.bf16.msra.mxu0 0
  %176 = vmatprep.subr.bf16.mxu0 0
  %177 = vmatpush1.bf16.msra.mxu0 0
  %178 = vmatprep.subr.bf16.mxu0 0
  %179 = vmatpush1.bf16.msra.mxu0 0
  %180 = vmatprep.subr.bf16.mxu0 0
  %181 = vmatpush1.bf16.msra.mxu0 0
  %182 = vmatprep.subr.bf16.mxu0 0
  %183 = vmatpush1.bf16.msra.mxu0 0
  %184 = vmatprep.subr.bf16.mxu0 0
  %185 = vmatpush1.bf16.msra.mxu0 0
  %186 = vmatprep.subr.bf16.mxu0 0
  %187 = vmatpush1.bf16.msra.mxu0 0
  %188 = vmatprep.mubr.bf16.mxu0 0
  %189 = vmatmul.mubr.bf16.gmra.mrb[0].mxu0 %v92
  %v190 = vpop.f32.mrb[0].mxu0
  %v191 = vadd.f32 %v58, %v190
  %v192 = vpop.f32.mrb[0].mxu0
  %v193 = vpop.f32.mrb[0].mxu0
  %v194 = vadd.f32 %v58, %v193
  %v195 = vpop.f32.mrb[0].mxu0
  %196 = vmatprep.mubr.bf16.mxu0 0
  %197 = vmatmul.mubr.bf16.gmra.mrb[0].mxu0 %v93
  %v198 = vpop.f32.mrb[0].mxu0
  %v199 = vadd.f32 %v58, %v198
  %v200 = vpop.f32.mrb[0].mxu0
  %v201 = vpop.f32.mrb[0].mxu0
  %v202 = vadd.f32 %v58, %v201
  %v203 = vpop.f32.mrb[0].mxu0
  %204 = vmatprep.mubr.bf16.mxu0 0
  %205 = vmatmul.mubr.bf16.gmra.mrb[0].mxu0 %v94
  %v206 = vpop.f32.mrb[0].mxu0
  %v207 = vadd.f32 %v58, %v206
  %v208 = vpop.f32.mrb[0].mxu0
  %v209 = vpop.f32.mrb[0].mxu0
  %v210 = vadd.f32 %v58, %v209
  %v211 = vpop.f32.mrb[0].mxu0
  %212 = vmatprep.mubr.bf16.mxu0 0
  %213 = vmatmul.mubr.bf16.gmra.mrb[0].mxu0 %v95
  %v214 = vpop.f32.mrb[0].mxu0
  %v215 = vadd.f32 %v58, %v214
  %v216 = vpop.f32.mrb[0].mxu0
  %v217 = vpop.f32.mrb[0].mxu0
  %v218 = vadd.f32 %v58, %v217
  %v219 = vpop.f32.mrb[0].mxu0
  %220 = vmatprep.mubr.bf16.mxu0 0
  %221 = vmatmul.mubr.bf16.gmra.mrb[0].mxu0 %v96
  %v222 = vpop.f32.mrb[0].mxu0
  %v223 = vadd.f32 %v58, %v222
  %v224 = vpop.f32.mrb[0].mxu0
  %v225 = vpop.f32.mrb[0].mxu0
  %v226 = vadd.f32 %v58, %v225
  %v227 = vpop.f32.mrb[0].mxu0
  %228 = vmatprep.mubr.bf16.mxu0 0
  %229 = vmatmul.mubr.bf16.gmra.mrb[0].mxu0 %v97
  %v230 = vpop.f32.mrb[0].mxu0
  %v231 = vadd.f32 %v58, %v230
  %v232 = vpop.f32.mrb[0].mxu0
  %v233 = vpop.f32.mrb[0].mxu0
  %v234 = vadd.f32 %v58, %v233
  %v235 = vpop.f32.mrb[0].mxu0
  %236 = vmatprep.mubr.bf16.mxu0 0
  %237 = vmatmul.mubr.bf16.gmra.mrb[0].mxu0 %v98
  %v238 = vpop.f32.mrb[0].mxu0
  %v239 = vadd.f32 %v58, %v238
  %v240 = vpop.f32.mrb[0].mxu0
  %v241 = vpop.f32.mrb[0].mxu0
  %v242 = vadd.f32 %v58, %v241
  %v243 = vpop.f32.mrb[0].mxu0
  %244 = vmatprep.mubr.bf16.mxu0 0
  %245 = vmatmul.mubr.bf16.gmra.mrb[0].mxu0 %v99
  %v246 = vpop.f32.mrb[0].mxu0
  %v247 = vadd.f32 %v58, %v246
  %v248 = vpop.f32.mrb[0].mxu0
  %v249 = vpop.f32.mrb[0].mxu0
  %v250 = vadd.f32 %v58, %v249
  %v251 = vpop.f32.mrb[0].mxu0
  %252 = vdwg.mxu0
  %v253 = vmax.f32 %v191, 0.0
  %v254 = vmax.f32 %v194, 0.0
  %v255 = vmax.f32 %v199, 0.0
  %v256 = vmax.f32 %v202, 0.0
  %v257 = vmax.f32 %v207, 0.0
  %v258 = vmax.f32 %v210, 0.0
  %v259 = vmax.f32 %v215, 0.0
  %v260 = vmax.f32 %v218, 0.0
  %v261 = vmax.f32 %v223, 0.0
  %v262 = vmax.f32 %v226, 0.0
  %v263 = vmax.f32 %v231, 0.0
  %v264 = vmax.f32 %v234, 0.0
  %v265 = vmax.f32 %v239, 0.0
  %v266 = vmax.f32 %v242, 0.0
  %v267 = vmax.f32 %v247, 0.0
  %v268 = vmax.f32 %v250, 0.0
  %v269 = vpack.c.bf16 %v254, %v253
  %v270 = vpack.c.bf16 %v256, %v255
  %v271 = vpack.c.bf16 %v258, %v257
  %v272 = vpack.c.bf16 %v260, %v259
  %v273 = vpack.c.bf16 %v262, %v261
  %v274 = vpack.c.bf16 %v264, %v263
  %v275 = vpack.c.bf16 %v266, %v265
  %v276 = vpack.c.bf16 %v268, %v267
  %v277 = vld [vmem:[%s3] sm:$0xf]
  %v278 = vld [vmem:[%s3 + $0x4] sm:$0xf]
  %v279 = vld [vmem:[%s3 + $0x8] sm:$0xf]
  %v280 = vld [vmem:[%s3 + $0xc] sm:$0xf]
  %v281 = vld [vmem:[%s3 + $0x10] sm:$0xf]
  %v282 = vld [vmem:[%s3 + $0x14] sm:$0xf]
  %v283 = vld [vmem:[%s3 + $0x18] sm:$0xf]
  %v284 = vld [vmem:[%s3 + $0x1c] sm:$0xf]
  %v285 = vld [vmem:[%s3 + $0x20] sm:$0xf]
  %v286 = vld [vmem:[%s3 + $0x24] sm:$0xf]
  %v287 = vld [vmem:[%s3 + $0x28] sm:$0xf]
  %v288 = vld [vmem:[%s3 + $0x2c] sm:$0xf]
  %v289 = vld [vmem:[%s3 + $0x30] sm:$0xf]
  %v290 = vld [vmem:[%s3 + $0x34] sm:$0xf]
  %v291 = vld [vmem:[%s3 + $0x38] sm:$0xf]
  %v292 = vld [vmem:[%s3 + $0x3c] sm:$0xf]
  %v293 = vld [vmem:[%s4] sm:$0x1]
  %v295 = vlaneseq
  %v296 = vshrl.u32 %v295, 7
  %v297 = vsub.s32 0, %v296
  %v298 = vrot.slane %v293, %v297
  %v316 = vunpack.c.l.b16 %v277
  %v317 = vunpack.c.l.b16 %v278
  %v318 = vunpack.c.l.b16 %v279
  %v319 = vunpack.c.l.b16 %v280
  %v320 = vunpack.c.l.b16 %v281
  %v321 = vunpack.c.l.b16 %v282
  %v322 = vunpack.c.l.b16 %v283
  %v323 = vunpack.c.l.b16 %v284
  %v324 = vunpack.c.l.b16 %v285
  %v325 = vunpack.c.l.b16 %v286
  %v326 = vunpack.c.l.b16 %v287
  %v327 = vunpack.c.l.b16 %v288
  %v328 = vunpack.c.l.b16 %v289
  %v329 = vunpack.c.l.b16 %v290
  %v330 = vunpack.c.l.b16 %v291
  %v331 = vunpack.c.l.b16 %v292
  %v332 = vpack.c.b16 %v317, %v316
  %v333 = vpack.c.b16 %v319, %v318
  %v334 = vpack.c.b16 %v321, %v320
  %v335 = vpack.c.b16 %v323, %v322
  %v336 = vpack.c.b16 %v325, %v324
  %v337 = vpack.c.b16 %v327, %v326
  %v338 = vpack.c.b16 %v329, %v328
  %v339 = vpack.c.b16 %v331, %v330
  %348 = vmatprep.subr.bf16.mxu0 0
  %349 = vmatpush1.bf16.msra.mxu0 %v332
  %350 = vmatprep.subr.bf16.mxu0 0
  %351 = vmatpush1.bf16.msra.mxu0 %v333
  %352 = vmatprep.subr.bf16.mxu0 0
  %353 = vmatpush1.bf16.msra.mxu0 %v334
  %354 = vmatprep.subr.bf16.mxu0 0
  %355 = vmatpush1.bf16.msra.mxu0 %v335
  %356 = vmatprep.subr.bf16.mxu0 0
  %357 = vmatpush1.bf16.msra.mxu0 %v336
  %358 = vmatprep.subr.bf16.mxu0 0
  %359 = vmatpush1.bf16.msra.mxu0 %v337
  %360 = vmatprep.subr.bf16.mxu0 0
  %361 = vmatpush1.bf16.msra.mxu0 %v338
  %362 = vmatprep.subr.bf16.mxu0 0
  %363 = vmatpush1.bf16.msra.mxu0 %v339
  %364 = vmatprep.subr.bf16.mxu0 0
  %365 = vmatpush1.bf16.msra.mxu0 0
  %366 = vmatprep.subr.bf16.mxu0 0
  %367 = vmatpush1.bf16.msra.mxu0 0
  %368 = vmatprep.subr.bf16.mxu0 0
  %369 = vmatpush1.bf16.msra.mxu0 0
  %370 = vmatprep.subr.bf16.mxu0 0
  %371 = vmatpush1.bf16.msra.mxu0 0
  %372 = vmatprep.subr.bf16.mxu0 0
  %373 = vmatpush1.bf16.msra.mxu0 0
  %374 = vmatprep.subr.bf16.mxu0 0
  %375 = vmatpush1.bf16.msra.mxu0 0
  %376 = vmatprep.subr.bf16.mxu0 0
  %377 = vmatpush1.bf16.msra.mxu0 0
  %378 = vmatprep.subr.bf16.mxu0 0
  %379 = vmatpush1.bf16.msra.mxu0 0
  %380 = vmatprep.mubr.bf16.mxu0 0
  %381 = vmatmul.mubr.bf16.gmra.mrb[0].mxu0 %v269
  %v382 = vpop.f32.mrb[0].mxu0
  %v383 = vadd.f32 %v298, %v382
  %v384 = vpop.f32.mrb[0].mxu0
  %v385 = vpop.f32.mrb[0].mxu0
  %v386 = vadd.f32 %v298, %v385
  %v387 = vpop.f32.mrb[0].mxu0
  %388 = vmatprep.mubr.bf16.mxu0 0
  %389 = vmatmul.mubr.bf16.gmra.mrb[0].mxu0 %v270
  %v390 = vpop.f32.mrb[0].mxu0
  %v391 = vadd.f32 %v298, %v390
  %v392 = vpop.f32.mrb[0].mxu0
  %v393 = vpop.f32.mrb[0].mxu0
  %v394 = vadd.f32 %v298, %v393
  %v395 = vpop.f32.mrb[0].mxu0
  %396 = vmatprep.mubr.bf16.mxu0 0
  %397 = vmatmul.mubr.bf16.gmra.mrb[0].mxu0 %v271
  %v398 = vpop.f32.mrb[0].mxu0
  %v399 = vadd.f32 %v298, %v398
  %v400 = vpop.f32.mrb[0].mxu0
  %v401 = vpop.f32.mrb[0].mxu0
  %v402 = vadd.f32 %v298, %v401
  %v403 = vpop.f32.mrb[0].mxu0
  %404 = vmatprep.mubr.bf16.mxu0 0
  %405 = vmatmul.mubr.bf16.gmra.mrb[0].mxu0 %v272
  %v406 = vpop.f32.mrb[0].mxu0
  %v407 = vadd.f32 %v298, %v406
  %v408 = vpop.f32.mrb[0].mxu0
  %v409 = vpop.f32.mrb[0].mxu0
  %v410 = vadd.f32 %v298, %v409
  %v411 = vpop.f32.mrb[0].mxu0
  %412 = vmatprep.mubr.bf16.mxu0 0
  %413 = vmatmul.mubr.bf16.gmra.mrb[0].mxu0 %v273
  %v414 = vpop.f32.mrb[0].mxu0
  %v415 = vadd.f32 %v298, %v414
  %v416 = vpop.f32.mrb[0].mxu0
  %v417 = vpop.f32.mrb[0].mxu0
  %v418 = vadd.f32 %v298, %v417
  %v419 = vpop.f32.mrb[0].mxu0
  %420 = vmatprep.mubr.bf16.mxu0 0
  %421 = vmatmul.mubr.bf16.gmra.mrb[0].mxu0 %v274
  %v422 = vpop.f32.mrb[0].mxu0
  %v423 = vadd.f32 %v298, %v422
  %v424 = vpop.f32.mrb[0].mxu0
  %v425 = vpop.f32.mrb[0].mxu0
  %v426 = vadd.f32 %v298, %v425
  %v427 = vpop.f32.mrb[0].mxu0
  %428 = vmatprep.mubr.bf16.mxu0 0
  %429 = vmatmul.mubr.bf16.gmra.mrb[0].mxu0 %v275
  %v430 = vpop.f32.mrb[0].mxu0
  %v431 = vadd.f32 %v298, %v430
  %v432 = vpop.f32.mrb[0].mxu0
  %v433 = vpop.f32.mrb[0].mxu0
  %v434 = vadd.f32 %v298, %v433
  %v435 = vpop.f32.mrb[0].mxu0
  %436 = vmatprep.mubr.bf16.mxu0 0
  %437 = vmatmul.mubr.bf16.gmra.mrb[0].mxu0 %v276
  %v438 = vpop.f32.mrb[0].mxu0
  %v439 = vadd.f32 %v298, %v438
  %v440 = vpop.f32.mrb[0].mxu0
  %v441 = vpop.f32.mrb[0].mxu0
  %v442 = vadd.f32 %v298, %v441
  %v443 = vpop.f32.mrb[0].mxu0
  %444 = vdwg.mxu0
  %v445 = vpack.c.bf16 %v386, %v383
  %v446 = vpack.c.bf16 %v394, %v391
  %v447 = vpack.c.bf16 %v402, %v399
  %v448 = vpack.c.bf16 %v410, %v407
  %v449 = vpack.c.bf16 %v418, %v415
  %v450 = vpack.c.bf16 %v426, %v423
  %v451 = vpack.c.bf16 %v434, %v431
  %v452 = vpack.c.bf16 %v442, %v439
  %v461 = vunpack.c.l.b16 %v445
  %v462 = vunpack.c.h.b16 %v445
  %v463 = vunpack.c.l.b16 %v446
  %v464 = vunpack.c.h.b16 %v446
  %v465 = vunpack.c.l.b16 %v447
  %v466 = vunpack.c.h.b16 %v447
  %v467 = vunpack.c.l.b16 %v448
  %v468 = vunpack.c.h.b16 %v448
  %v469 = vunpack.c.l.b16 %v449
  %v470 = vunpack.c.h.b16 %v449
  %v471 = vunpack.c.l.b16 %v450
  %v472 = vunpack.c.h.b16 %v450
  %v473 = vunpack.c.l.b16 %v451
  %v474 = vunpack.c.h.b16 %v451
  %v475 = vunpack.c.l.b16 %v452
  %v476 = vunpack.c.h.b16 %v452
  %v477 = vpack.c.b16 %v461, %v461
  %v478 = vpack.c.b16 %v462, %v462
  %v479 = vpack.c.b16 %v463, %v463
  %v480 = vpack.c.b16 %v464, %v464
  %v481 = vpack.c.b16 %v465, %v465
  %v482 = vpack.c.b16 %v466, %v466
  %v483 = vpack.c.b16 %v467, %v467
  %v484 = vpack.c.b16 %v468, %v468
  %v485 = vpack.c.b16 %v469, %v469
  %v486 = vpack.c.b16 %v470, %v470
  %v487 = vpack.c.b16 %v471, %v471
  %v488 = vpack.c.b16 %v472, %v472
  %v489 = vpack.c.b16 %v473, %v473
  %v490 = vpack.c.b16 %v474, %v474
  %v491 = vpack.c.b16 %v475, %v475
  %v492 = vpack.c.b16 %v476, %v476
  %509 = vst [vmem:[%s5] sm:$0xf] %v477
  %510 = vst [vmem:[%s5 + $0x4] sm:$0xf] %v478
  %511 = vst [vmem:[%s5 + $0x8] sm:$0xf] %v479
  %512 = vst [vmem:[%s5 + $0xc] sm:$0xf] %v480
  %513 = vst [vmem:[%s5 + $0x10] sm:$0xf] %v481
  %514 = vst [vmem:[%s5 + $0x14] sm:$0xf] %v482
  %515 = vst [vmem:[%s5 + $0x18] sm:$0xf] %v483
  %516 = vst [vmem:[%s5 + $0x1c] sm:$0xf] %v484
  %517 = vst [vmem:[%s5 + $0x20] sm:$0xf] %v485
  %518 = vst [vmem:[%s5 + $0x24] sm:$0xf] %v486
  %519 = vst [vmem:[%s5 + $0x28] sm:$0xf] %v487
  %520 = vst [vmem:[%s5 + $0x2c] sm:$0xf] %v488
  %521 = vst [vmem:[%s5 + $0x30] sm:$0xf] %v489
  %522 = vst [vmem:[%s5 + $0x34] sm:$0xf] %v490
  %523 = vst [vmem:[%s5 + $0x38] sm:$0xf] %v491
  %524 = vst [vmem:[%s5 + $0x3c] sm:$0xf] %v492
  // Predicated region
  $region22: #{gnn_classifier_forward.4} parent=0 // pred_check
    _
  $region23: #{gnn_classifier_forward.4} parent=0 // pred_check_branch
    %526 = sbr.rel (0) target = $region25
  $region24: #{gnn_classifier_forward.4} parent=0 // pred_region
    _
  $region25: #{gnn_classifier_forward.4} parent=0 // pred_fallthru
    _
  // Predicated region
  $region26: #{gnn_classifier_forward.4} parent=0 // pred_check
    _
  $region27: #{gnn_classifier_forward.4} parent=0 // pred_check_branch
    %528 = sbr.rel (0) target = $region29
  $region28: #{gnn_classifier_forward.4} parent=0 // pred_region
    _
  $region29: #{gnn_classifier_forward.4} parent=0 // pred_fallthru
    _

// kernel: gnn_classifier_forward.5
$region0: #{gnn_classifier_forward.5}
  #allocation0 [shape = 'u32[]', space=smem, size = 0x4, offset = 0x4, fixed_abs, tag = 'smem constant byte address 0x4 - core index']
  #allocation1 [shape = 'u32[144,128]{1,0:T(1,128)}', space=vmem, size = 0x12000, scoped, tag = 'internal scratch']
  %s0 = inlined_call_operand.vmem [shape: bf16[128,128], index: 0, kind: input, shape index: {}]
  %s1 = inlined_call_operand.vmem [shape: bf16[128,128], index: 1, kind: input, shape index: {}]
  %s2 = inlined_call_operand.vmem [shape: f32[1,128], index: 2, kind: input, shape index: {}]
  %s3 = inlined_call_operand.vmem [shape: bf16[128,128], index: 3, kind: input, shape index: {}]
  %s4 = inlined_call_operand.vmem [shape: f32[1,128], index: 4, kind: input, shape index: {}]
  %s5 = inlined_call_operand.vmem [shape: f32[128,128], index: 5, kind: output, shape index: {}]
  %s6 = sld [smem:[#allocation0]]
  $region30: #{gnn_classifier_forward.5} parent=0
    _
  %s8 = ssub.s32 1, %s6
  %s9 = scalar_select 0, %s8, %s6
  // Predicated region
  $region2: #{gnn_classifier_forward.5} parent=0 // pred_check
    _
  $region3: #{gnn_classifier_forward.5} parent=0 // pred_check_branch
    %11 = sbr.rel (0) target = $region5
  $region4: #{gnn_classifier_forward.5} parent=0 // pred_region
    _
  $region5: #{gnn_classifier_forward.5} parent=0 // pred_fallthru
    _
  // Predicated region
  $region6: #{gnn_classifier_forward.5} parent=0 // pred_check
    _
  $region7: #{gnn_classifier_forward.5} parent=0 // pred_check_branch
    %13 = sbr.rel (0) target = $region9
  $region8: #{gnn_classifier_forward.5} parent=0 // pred_region
    _
  $region9: #{gnn_classifier_forward.5} parent=0 // pred_fallthru
    _
  // Predicated region
  $region10: #{gnn_classifier_forward.5} parent=0 // pred_check
    _
  $region11: #{gnn_classifier_forward.5} parent=0 // pred_check_branch
    %15 = sbr.rel (0) target = $region13
  $region12: #{gnn_classifier_forward.5} parent=0 // pred_region
    _
  $region13: #{gnn_classifier_forward.5} parent=0 // pred_fallthru
    _
  // Predicated region
  $region14: #{gnn_classifier_forward.5} parent=0 // pred_check
    _
  $region15: #{gnn_classifier_forward.5} parent=0 // pred_check_branch
    %17 = sbr.rel (0) target = $region17
  $region16: #{gnn_classifier_forward.5} parent=0 // pred_region
    _
  $region17: #{gnn_classifier_forward.5} parent=0 // pred_fallthru
    _
  // Predicated region
  $region18: #{gnn_classifier_forward.5} parent=0 // pred_check
    _
  $region19: #{gnn_classifier_forward.5} parent=0 // pred_check_branch
    %19 = sbr.rel (0) target = $region21
  $region20: #{gnn_classifier_forward.5} parent=0 // pred_region
    _
  $region21: #{gnn_classifier_forward.5} parent=0 // pred_fallthru
    _
  %v21 = vld [vmem:[%s0] sm:$0xf]
  %v22 = vld [vmem:[%s0 + $0x4] sm:$0xf]
  %v23 = vld [vmem:[%s0 + $0x8] sm:$0xf]
  %v24 = vld [vmem:[%s0 + $0xc] sm:$0xf]
  %v25 = vld [vmem:[%s0 + $0x10] sm:$0xf]
  %v26 = vld [vmem:[%s0 + $0x14] sm:$0xf]
  %v27 = vld [vmem:[%s0 + $0x18] sm:$0xf]
  %v28 = vld [vmem:[%s0 + $0x1c] sm:$0xf]
  %v29 = vld [vmem:[%s0 + $0x20] sm:$0xf]
  %v30 = vld [vmem:[%s0 + $0x24] sm:$0xf]
  %v31 = vld [vmem:[%s0 + $0x28] sm:$0xf]
  %v32 = vld [vmem:[%s0 + $0x2c] sm:$0xf]
  %v33 = vld [vmem:[%s0 + $0x30] sm:$0xf]
  %v34 = vld [vmem:[%s0 + $0x34] sm:$0xf]
  %v35 = vld [vmem:[%s0 + $0x38] sm:$0xf]
  %v36 = vld [vmem:[%s0 + $0x3c] sm:$0xf]
  %v37 = vld [vmem:[%s1] sm:$0xf]
  %v38 = vld [vmem:[%s1 + $0x4] sm:$0xf]
  %v39 = vld [vmem:[%s1 + $0x8] sm:$0xf]
  %v40 = vld [vmem:[%s1 + $0xc] sm:$0xf]
  %v41 = vld [vmem:[%s1 + $0x10] sm:$0xf]
  %v42 = vld [vmem:[%s1 + $0x14] sm:$0xf]
  %v43 = vld [vmem:[%s1 + $0x18] sm:$0xf]
  %v44 = vld [vmem:[%s1 + $0x1c] sm:$0xf]
  %v45 = vld [vmem:[%s1 + $0x20] sm:$0xf]
  %v46 = vld [vmem:[%s1 + $0x24] sm:$0xf]
  %v47 = vld [vmem:[%s1 + $0x28] sm:$0xf]
  %v48 = vld [vmem:[%s1 + $0x2c] sm:$0xf]
  %v49 = vld [vmem:[%s1 + $0x30] sm:$0xf]
  %v50 = vld [vmem:[%s1 + $0x34] sm:$0xf]
  %v51 = vld [vmem:[%s1 + $0x38] sm:$0xf]
  %v52 = vld [vmem:[%s1 + $0x3c] sm:$0xf]
  %v53 = vld [vmem:[%s2] sm:$0x1]
  %v55 = vlaneseq
  %v56 = vshrl.u32 %v55, 7
  %v57 = vsub.s32 0, %v56
  %v58 = vrot.slane %v53, %v57
  %v76 = vunpack.c.l.b16 %v21
  %v77 = vunpack.c.l.b16 %v22
  %v78 = vunpack.c.l.b16 %v23
  %v79 = vunpack.c.l.b16 %v24
  %v80 = vunpack.c.l.b16 %v25
  %v81 = vunpack.c.l.b16 %v26
  %v82 = vunpack.c.l.b16 %v27
  %v83 = vunpack.c.l.b16 %v28
  %v84 = vunpack.c.l.b16 %v29
  %v85 = vunpack.c.l.b16 %v30
  %v86 = vunpack.c.l.b16 %v31
  %v87 = vunpack.c.l.b16 %v32
  %v88 = vunpack.c.l.b16 %v33
  %v89 = vunpack.c.l.b16 %v34
  %v90 = vunpack.c.l.b16 %v35
  %v91 = vunpack.c.l.b16 %v36
  %v92 = vpack.c.b16 %v77, %v76
  %v93 = vpack.c.b16 %v79, %v78
  %v94 = vpack.c.b16 %v81, %v80
  %v95 = vpack.c.b16 %v83, %v82
  %v96 = vpack.c.b16 %v85, %v84
  %v97 = vpack.c.b16 %v87, %v86
  %v98 = vpack.c.b16 %v89, %v88
  %v99 = vpack.c.b16 %v91, %v90
  %v124 = vunpack.c.l.b16 %v37
  %v125 = vunpack.c.l.b16 %v38
  %v126 = vunpack.c.l.b16 %v39
  %v127 = vunpack.c.l.b16 %v40
  %v128 = vunpack.c.l.b16 %v41
  %v129 = vunpack.c.l.b16 %v42
  %v130 = vunpack.c.l.b16 %v43
  %v131 = vunpack.c.l.b16 %v44
  %v132 = vunpack.c.l.b16 %v45
  %v133 = vunpack.c.l.b16 %v46
  %v134 = vunpack.c.l.b16 %v47
  %v135 = vunpack.c.l.b16 %v48
  %v136 = vunpack.c.l.b16 %v49
  %v137 = vunpack.c.l.b16 %v50
  %v138 = vunpack.c.l.b16 %v51
  %v139 = vunpack.c.l.b16 %v52
  %v140 = vpack.c.b16 %v125, %v124
  %v141 = vpack.c.b16 %v127, %v126
  %v142 = vpack.c.b16 %v129, %v128
  %v143 = vpack.c.b16 %v131, %v130
  %v144 = vpack.c.b16 %v133, %v132
  %v145 = vpack.c.b16 %v135, %v134
  %v146 = vpack.c.b16 %v137, %v136
  %v147 = vpack.c.b16 %v139, %v138
  %156 = vmatprep.subr.bf16.mxu0 0
  %157 = vmatpush1.bf16.msra.mxu0 %v140
  %158 = vmatprep.subr.bf16.mxu0 0
  %159 = vmatpush1.bf16.msra.mxu0 %v141
  %160 = vmatprep.subr.bf16.mxu0 0
  %161 = vmatpush1.bf16.msra.mxu0 %v142
  %162 = vmatprep.subr.bf16.mxu0 0
  %163 = vmatpush1.bf16.msra.mxu0 %v143
  %164 = vmatprep.subr.bf16.mxu0 0
  %165 = vmatpush1.bf16.msra.mxu0 %v144
  %166 = vmatprep.subr.bf16.mxu0 0
  %167 = vmatpush1.bf16.msra.mxu0 %v145
  %168 = vmatprep.subr.bf16.mxu0 0
  %169 = vmatpush1.bf16.msra.mxu0 %v146
  %170 = vmatprep.subr.bf16.mxu0 0
  %171 = vmatpush1.bf16.msra.mxu0 %v147
  %172 = vmatprep.subr.bf16.mxu0 0
  %173 = vmatpush1.bf16.msra.mxu0 0
  %174 = vmatprep.subr.bf16.mxu0 0
  %175 = vmatpush1.bf16.msra.mxu0 0
  %176 = vmatprep.subr.bf16.mxu0 0
  %177 = vmatpush1.bf16.msra.mxu0 0
  %178 = vmatprep.subr.bf16.mxu0 0
  %179 = vmatpush1.bf16.msra.mxu0 0
  %180 = vmatprep.subr.bf16.mxu0 0
  %181 = vmatpush1.bf16.msra.mxu0 0
  %182 = vmatprep.subr.bf16.mxu0 0
  %183 = vmatpush1.bf16.msra.mxu0 0
  %184 = vmatprep.subr.bf16.mxu0 0
  %185 = vmatpush1.bf16.msra.mxu0 0
  %186 = vmatprep.subr.bf16.mxu0 0
  %187 = vmatpush1.bf16.msra.mxu0 0
  %188 = vmatprep.mubr.bf16.mxu0 0
  %189 = vmatmul.mubr.bf16.gmra.mrb[0].mxu0 %v92
  %v190 = vpop.f32.mrb[0].mxu0
  %v191 = vadd.f32 %v58, %v190
  %v192 = vpop.f32.mrb[0].mxu0
  %v193 = vpop.f32.mrb[0].mxu0
  %v194 = vadd.f32 %v58, %v193
  %v195 = vpop.f32.mrb[0].mxu0
  %196 = vmatprep.mubr.bf16.mxu0 0
  %197 = vmatmul.mubr.bf16.gmra.mrb[0].mxu0 %v93
  %v198 = vpop.f32.mrb[0].mxu0
  %v199 = vadd.f32 %v58, %v198
  %v200 = vpop.f32.mrb[0].mxu0
  %v201 = vpop.f32.mrb[0].mxu0
  %v202 = vadd.f32 %v58, %v201
  %v203 = vpop.f32.mrb[0].mxu0
  %204 = vmatprep.mubr.bf16.mxu0 0
  %205 = vmatmul.mubr.bf16.gmra.mrb[0].mxu0 %v94
  %v206 = vpop.f32.mrb[0].mxu0
  %v207 = vadd.f32 %v58, %v206
  %v208 = vpop.f32.mrb[0].mxu0
  %v209 = vpop.f32.mrb[0].mxu0
  %v210 = vadd.f32 %v58, %v209
  %v211 = vpop.f32.mrb[0].mxu0
  %212 = vmatprep.mubr.bf16.mxu0 0
  %213 = vmatmul.mubr.bf16.gmra.mrb[0].mxu0 %v95
  %v214 = vpop.f32.mrb[0].mxu0
  %v215 = vadd.f32 %v58, %v214
  %v216 = vpop.f32.mrb[0].mxu0
  %v217 = vpop.f32.mrb[0].mxu0
  %v218 = vadd.f32 %v58, %v217
  %v219 = vpop.f32.mrb[0].mxu0
  %220 = vmatprep.mubr.bf16.mxu0 0
  %221 = vmatmul.mubr.bf16.gmra.mrb[0].mxu0 %v96
  %v222 = vpop.f32.mrb[0].mxu0
  %v223 = vadd.f32 %v58, %v222
  %v224 = vpop.f32.mrb[0].mxu0
  %v225 = vpop.f32.mrb[0].mxu0
  %v226 = vadd.f32 %v58, %v225
  %v227 = vpop.f32.mrb[0].mxu0
  %228 = vmatprep.mubr.bf16.mxu0 0
  %229 = vmatmul.mubr.bf16.gmra.mrb[0].mxu0 %v97
  %v230 = vpop.f32.mrb[0].mxu0
  %v231 = vadd.f32 %v58, %v230
  %v232 = vpop.f32.mrb[0].mxu0
  %v233 = vpop.f32.mrb[0].mxu0
  %v234 = vadd.f32 %v58, %v233
  %v235 = vpop.f32.mrb[0].mxu0
  %236 = vmatprep.mubr.bf16.mxu0 0
  %237 = vmatmul.mubr.bf16.gmra.mrb[0].mxu0 %v98
  %v238 = vpop.f32.mrb[0].mxu0
  %v239 = vadd.f32 %v58, %v238
  %v240 = vpop.f32.mrb[0].mxu0
  %v241 = vpop.f32.mrb[0].mxu0
  %v242 = vadd.f32 %v58, %v241
  %v243 = vpop.f32.mrb[0].mxu0
  %244 = vmatprep.mubr.bf16.mxu0 0
  %245 = vmatmul.mubr.bf16.gmra.mrb[0].mxu0 %v99
  %v246 = vpop.f32.mrb[0].mxu0
  %v247 = vadd.f32 %v58, %v246
  %v248 = vpop.f32.mrb[0].mxu0
  %v249 = vpop.f32.mrb[0].mxu0
  %v250 = vadd.f32 %v58, %v249
  %v251 = vpop.f32.mrb[0].mxu0
  %252 = vdwg.mxu0
  %v253 = vmax.f32 %v191, 0.0
  %v254 = vmax.f32 %v194, 0.0
  %v255 = vmax.f32 %v199, 0.0
  %v256 = vmax.f32 %v202, 0.0
  %v257 = vmax.f32 %v207, 0.0
  %v258 = vmax.f32 %v210, 0.0
  %v259 = vmax.f32 %v215, 0.0
  %v260 = vmax.f32 %v218, 0.0
  %v261 = vmax.f32 %v223, 0.0
  %v262 = vmax.f32 %v226, 0.0
  %v263 = vmax.f32 %v231, 0.0
  %v264 = vmax.f32 %v234, 0.0
  %v265 = vmax.f32 %v239, 0.0
  %v266 = vmax.f32 %v242, 0.0
  %v267 = vmax.f32 %v247, 0.0
  %v268 = vmax.f32 %v250, 0.0
  %v269 = vpack.c.bf16 %v254, %v253
  %v270 = vpack.c.bf16 %v256, %v255
  %v271 = vpack.c.bf16 %v258, %v257
  %v272 = vpack.c.bf16 %v260, %v259
  %v273 = vpack.c.bf16 %v262, %v261
  %v274 = vpack.c.bf16 %v264, %v263
  %v275 = vpack.c.bf16 %v266, %v265
  %v276 = vpack.c.bf16 %v268, %v267
  %v277 = vld [vmem:[%s3] sm:$0xf]
  %v278 = vld [vmem:[%s3 + $0x4] sm:$0xf]
  %v279 = vld [vmem:[%s3 + $0x8] sm:$0xf]
  %v280 = vld [vmem:[%s3 + $0xc] sm:$0xf]
  %v281 = vld [vmem:[%s3 + $0x10] sm:$0xf]
  %v282 = vld [vmem:[%s3 + $0x14] sm:$0xf]
  %v283 = vld [vmem:[%s3 + $0x18] sm:$0xf]
  %v284 = vld [vmem:[%s3 + $0x1c] sm:$0xf]
  %v285 = vld [vmem:[%s3 + $0x20] sm:$0xf]
  %v286 = vld [vmem:[%s3 + $0x24] sm:$0xf]
  %v287 = vld [vmem:[%s3 + $0x28] sm:$0xf]
  %v288 = vld [vmem:[%s3 + $0x2c] sm:$0xf]
  %v289 = vld [vmem:[%s3 + $0x30] sm:$0xf]
  %v290 = vld [vmem:[%s3 + $0x34] sm:$0xf]
  %v291 = vld [vmem:[%s3 + $0x38] sm:$0xf]
  %v292 = vld [vmem:[%s3 + $0x3c] sm:$0xf]
  %v293 = vld [vmem:[%s4] sm:$0x1]
  %v295 = vlaneseq
  %v296 = vshrl.u32 %v295, 7
  %v297 = vsub.s32 0, %v296
  %v298 = vrot.slane %v293, %v297
  %v316 = vunpack.c.l.b16 %v277
  %v317 = vunpack.c.l.b16 %v278
  %v318 = vunpack.c.l.b16 %v279
  %v319 = vunpack.c.l.b16 %v280
  %v320 = vunpack.c.l.b16 %v281
  %v321 = vunpack.c.l.b16 %v282
  %v322 = vunpack.c.l.b16 %v283
  %v323 = vunpack.c.l.b16 %v284
  %v324 = vunpack.c.l.b16 %v285
  %v325 = vunpack.c.l.b16 %v286
  %v326 = vunpack.c.l.b16 %v287
  %v327 = vunpack.c.l.b16 %v288
  %v328 = vunpack.c.l.b16 %v289
  %v329 = vunpack.c.l.b16 %v290
  %v330 = vunpack.c.l.b16 %v291
  %v331 = vunpack.c.l.b16 %v292
  %v332 = vpack.c.b16 %v317, %v316
  %v333 = vpack.c.b16 %v319, %v318
  %v334 = vpack.c.b16 %v321, %v320
  %v335 = vpack.c.b16 %v323, %v322
  %v336 = vpack.c.b16 %v325, %v324
  %v337 = vpack.c.b16 %v327, %v326
  %v338 = vpack.c.b16 %v329, %v328
  %v339 = vpack.c.b16 %v331, %v330
  %348 = vmatprep.subr.bf16.mxu0 0
  %349 = vmatpush1.bf16.msra.mxu0 %v332
  %350 = vmatprep.subr.bf16.mxu0 0
  %351 = vmatpush1.bf16.msra.mxu0 %v333
  %352 = vmatprep.subr.bf16.mxu0 0
  %353 = vmatpush1.bf16.msra.mxu0 %v334
  %354 = vmatprep.subr.bf16.mxu0 0
  %355 = vmatpush1.bf16.msra.mxu0 %v335
  %356 = vmatprep.subr.bf16.mxu0 0
  %357 = vmatpush1.bf16.msra.mxu0 %v336
  %358 = vmatprep.subr.bf16.mxu0 0
  %359 = vmatpush1.bf16.msra.mxu0 %v337
  %360 = vmatprep.subr.bf16.mxu0 0
  %361 = vmatpush1.bf16.msra.mxu0 %v338
  %362 = vmatprep.subr.bf16.mxu0 0
  %363 = vmatpush1.bf16.msra.mxu0 %v339
  %364 = vmatprep.subr.bf16.mxu0 0
  %365 = vmatpush1.bf16.msra.mxu0 0
  %366 = vmatprep.subr.bf16.mxu0 0
  %367 = vmatpush1.bf16.msra.mxu0 0
  %368 = vmatprep.subr.bf16.mxu0 0
  %369 = vmatpush1.bf16.msra.mxu0 0
  %370 = vmatprep.subr.bf16.mxu0 0
  %371 = vmatpush1.bf16.msra.mxu0 0
  %372 = vmatprep.subr.bf16.mxu0 0
  %373 = vmatpush1.bf16.msra.mxu0 0
  %374 = vmatprep.subr.bf16.mxu0 0
  %375 = vmatpush1.bf16.msra.mxu0 0
  %376 = vmatprep.subr.bf16.mxu0 0
  %377 = vmatpush1.bf16.msra.mxu0 0
  %378 = vmatprep.subr.bf16.mxu0 0
  %379 = vmatpush1.bf16.msra.mxu0 0
  %380 = vmatprep.mubr.bf16.mxu0 0
  %381 = vmatmul.mubr.bf16.gmra.mrb[0].mxu0 %v269
  %v382 = vpop.f32.mrb[0].mxu0
  %v383 = vadd.f32 %v298, %v382
  %v384 = vpop.f32.mrb[0].mxu0
  %v385 = vpop.f32.mrb[0].mxu0
  %v386 = vadd.f32 %v298, %v385
  %v387 = vpop.f32.mrb[0].mxu0
  %388 = vmatprep.mubr.bf16.mxu0 0
  %389 = vmatmul.mubr.bf16.gmra.mrb[0].mxu0 %v270
  %v390 = vpop.f32.mrb[0].mxu0
  %v391 = vadd.f32 %v298, %v390
  %v392 = vpop.f32.mrb[0].mxu0
  %v393 = vpop.f32.mrb[0].mxu0
  %v394 = vadd.f32 %v298, %v393
  %v395 = vpop.f32.mrb[0].mxu0
  %396 = vmatprep.mubr.bf16.mxu0 0
  %397 = vmatmul.mubr.bf16.gmra.mrb[0].mxu0 %v271
  %v398 = vpop.f32.mrb[0].mxu0
  %v399 = vadd.f32 %v298, %v398
  %v400 = vpop.f32.mrb[0].mxu0
  %v401 = vpop.f32.mrb[0].mxu0
  %v402 = vadd.f32 %v298, %v401
  %v403 = vpop.f32.mrb[0].mxu0
  %404 = vmatprep.mubr.bf16.mxu0 0
  %405 = vmatmul.mubr.bf16.gmra.mrb[0].mxu0 %v272
  %v406 = vpop.f32.mrb[0].mxu0
  %v407 = vadd.f32 %v298, %v406
  %v408 = vpop.f32.mrb[0].mxu0
  %v409 = vpop.f32.mrb[0].mxu0
  %v410 = vadd.f32 %v298, %v409
  %v411 = vpop.f32.mrb[0].mxu0
  %412 = vmatprep.mubr.bf16.mxu0 0
  %413 = vmatmul.mubr.bf16.gmra.mrb[0].mxu0 %v273
  %v414 = vpop.f32.mrb[0].mxu0
  %v415 = vadd.f32 %v298, %v414
  %v416 = vpop.f32.mrb[0].mxu0
  %v417 = vpop.f32.mrb[0].mxu0
  %v418 = vadd.f32 %v298, %v417
  %v419 = vpop.f32.mrb[0].mxu0
  %420 = vmatprep.mubr.bf16.mxu0 0
  %421 = vmatmul.mubr.bf16.gmra.mrb[0].mxu0 %v274
  %v422 = vpop.f32.mrb[0].mxu0
  %v423 = vadd.f32 %v298, %v422
  %v424 = vpop.f32.mrb[0].mxu0
  %v425 = vpop.f32.mrb[0].mxu0
  %v426 = vadd.f32 %v298, %v425
  %v427 = vpop.f32.mrb[0].mxu0
  %428 = vmatprep.mubr.bf16.mxu0 0
  %429 = vmatmul.mubr.bf16.gmra.mrb[0].mxu0 %v275
  %v430 = vpop.f32.mrb[0].mxu0
  %v431 = vadd.f32 %v298, %v430
  %v432 = vpop.f32.mrb[0].mxu0
  %v433 = vpop.f32.mrb[0].mxu0
  %v434 = vadd.f32 %v298, %v433
  %v435 = vpop.f32.mrb[0].mxu0
  %436 = vmatprep.mubr.bf16.mxu0 0
  %437 = vmatmul.mubr.bf16.gmra.mrb[0].mxu0 %v276
  %v438 = vpop.f32.mrb[0].mxu0
  %v439 = vadd.f32 %v298, %v438
  %v440 = vpop.f32.mrb[0].mxu0
  %v441 = vpop.f32.mrb[0].mxu0
  %v442 = vadd.f32 %v298, %v441
  %v443 = vpop.f32.mrb[0].mxu0
  %444 = vdwg.mxu0
  %445 = vst [vmem:[%s5] sm:$0xff] %v383
  %446 = vst [vmem:[%s5 + $0x8] sm:$0xff] %v386
  %447 = vst [vmem:[%s5 + $0x10] sm:$0xff] %v391
  %448 = vst [vmem:[%s5 + $0x18] sm:$0xff] %v394
  %449 = vst [vmem:[%s5 + $0x20] sm:$0xff] %v399
  %450 = vst [vmem:[%s5 + $0x28] sm:$0xff] %v402
  %451 = vst [vmem:[%s5 + $0x30] sm:$0xff] %v407
  %452 = vst [vmem:[%s5 + $0x38] sm:$0xff] %v410
  %453 = vst [vmem:[%s5 + $0x40] sm:$0xff] %v415
  %454 = vst [vmem:[%s5 + $0x48] sm:$0xff] %v418
  %455 = vst [vmem:[%s5 + $0x50] sm:$0xff] %v423
  %456 = vst [vmem:[%s5 + $0x58] sm:$0xff] %v426
  %457 = vst [vmem:[%s5 + $0x60] sm:$0xff] %v431
  %458 = vst [vmem:[%s5 + $0x68] sm:$0xff] %v434
  %459 = vst [vmem:[%s5 + $0x70] sm:$0xff] %v439
  %460 = vst [vmem:[%s5 + $0x78] sm:$0xff] %v442
  // Predicated region
  $region22: #{gnn_classifier_forward.5} parent=0 // pred_check
    _
  $region23: #{gnn_classifier_forward.5} parent=0 // pred_check_branch
    %462 = sbr.rel (0) target = $region25
  $region24: #{gnn_classifier_forward.5} parent=0 // pred_region
    _
  $region25: #{gnn_classifier_forward.5} parent=0 // pred_fallthru
    _
  // Predicated region
  $region26: #{gnn_classifier_forward.5} parent=0 // pred_check
    _
  $region27: #{gnn_classifier_forward.5} parent=0 // pred_check_branch
    %464 = sbr.rel (0) target = $region29
  $region28: #{gnn_classifier_forward.5} parent=0 // pred_region
    _
  $region29: #{gnn_classifier_forward.5} parent=0 // pred_fallthru
    _

</llo_original>
